<compile_context>
chip_gen: v6e
topology: v6e:2x2x1
jax: 0.10.0
libtpu: 0.0.40
codegen_flags: <defaults>
</compile_context>

<pallas_src>
import jax
import jax.numpy as jnp
from jax.experimental import pallas as pl
from jax.experimental.pallas import tpu as pltpu

# ----------------------------- small test dims ------------------------------
B = 2           # batch
CB = 128        # backbone layer4 channels (real resnet101 = 2048, scaled down)
HF, WF = 6, 6   # backbone feature-map spatial size
HW = HF * WF    # 36
HIDDEN = 32     # hidden_dim
N_OBJ = 10      # number of faster-rcnn object features per image
OBJ_DIM = 1024  # object feature dim (nn.Linear(1024, hidden_dim))
SEQ = HW + N_OBJ            # 46
MLP_HID = 512   # MLP(hidden_dim, 512, vocab_size, 3)
VOCAB = 64      # vocab_size
H_IMG, W_IMG = 24, 24       # original mask resolution (for F.interpolate)

# TPU-friendly padded dims (lane-dense / sublane-aligned)
HP = 128                           # HIDDEN padded to full lane width
VP = 128                           # VOCAB padded to full lane width
ROWS = ((B * SEQ + 7) // 8) * 8    # 92 -> 96 rows (multiple of 8 sublanes)


# ------------------------------- Pallas kernel --------------------------------
def caption_fused_kernel(feat_ref, obj_ref,
                         wc_ref, bc_ref, wl_ref, bl_ref,
                         w1_ref, b1_ref, w2_ref, b2_ref, w3_ref, b3_ref,
                         out_ref, seq_ref):
    """Fused forward: (BN-folded 1x1 conv) + object Linear -> concat -> 3-layer MLP.

    feat_ref: (B*HW, CB)          obj_ref: (B*N_OBJ, OBJ_DIM)
    wc/bc   : (CB, HP), (1, HP)   wl/bl  : (OBJ_DIM, HP), (1, HP)
    w1/b1   : (HP, MLP_HID)       w2/b2  : (MLP_HID, MLP_HID)   w3/b3: (MLP_HID, VP)
    out_ref : (ROWS, VP)          seq_ref: VMEM scratch (ROWS, HP)

    Scratch row layout (grouped so every store starts on an 8-row boundary):
      rows [0, B*HW)             : conv-projected image tokens (all batches)
      rows [B*HW, B*HW+B*N_OBJ)  : linear-projected object tokens (all batches)
      remaining rows             : zero padding (sliced off in the wrapper)
    """
    seq_ref[...] = jnp.zeros_like(seq_ref)

    # 1x1 conv (FrozenBatchNorm2d already folded into wc/bc on the host).
    fp = jnp.dot(feat_ref[...], wc_ref[...],
                 preferred_element_type=jnp.float32) + bc_ref[...]     # (B*HW, HP)
    # object feature Linear(1024 -> hidden)
    op = jnp.dot(obj_ref[...], wl_ref[...],
                 preferred_element_type=jnp.float32) + bl_ref[...]     # (B*N_OBJ, HP)

    seq_ref[0:B * HW, :] = fp
    seq_ref[B * HW:B * HW + B * N_OBJ, :] = op

    # MLP(hidden, 512, vocab, 3): relu(L1) -> relu(L2) -> L3, fused.
    h = seq_ref[...]
    h = jnp.maximum(
        jnp.dot(h, w1_ref[...], preferred_element_type=jnp.float32) + b1_ref[...], 0.0)
    h = jnp.maximum(
        jnp.dot(h, w2_ref[...], preferred_element_type=jnp.float32) + b2_ref[...], 0.0)
    out_ref[...] = jnp.dot(h, w3_ref[...],
                           preferred_element_type=jnp.float32) + b3_ref[...]


def caption_fused(feat_flat, obj_flat, wc, bc, wl, bl, w1, b1, w2, b2, w3, b3):
    """Single grid-less pallas_call; every operand resident in VMEM (< 3 MiB total)."""
    vmem = pl.BlockSpec(memory_space=pltpu.MemorySpace.VMEM)
    return pl.pallas_call(
        caption_fused_kernel,
        out_shape=jax.ShapeDtypeStruct((ROWS, VP), jnp.float32),
        in_specs=[vmem] * 12,
        out_specs=vmem,
        scratch_shapes=[pltpu.VMEM((ROWS, HP), jnp.float32)],
    )(feat_flat, obj_flat, wc, bc, wl, bl, w1, b1, w2, b2, w3, b3)


# --------------------------------- forward -----------------------------------
@jax.jit
def caption_forward(params, feat_nchw, mask_img, obj_feats, multi_pos_embedding):
    """Caption.forward (testing=False path).

    feat_nchw : (B, CB, HF, WF) backbone layer4 output (NCHW, like PyTorch).
    mask_img  : (B, H_IMG, W_IMG) bool padding mask (only feeds the external transformer).
    obj_feats : (B, N_OBJ, 1, OBJ_DIM) stacked faster-rcnn features (pre-squeeze(2)).
    """
    # TODO(synk): resnet101 backbone (self.body / self.cnn / FrozenBatchNorm layers
    # inside it) is external; kernel input is the layer4 feature map directly.

    # NCHW -> (B*HW, CB) channels-last (== flatten(2).permute(0,2,1) with batch folded in).
    feat = jnp.transpose(feat_nchw, (0, 2, 3, 1)).reshape(B * HW, CB)

    # Fold FrozenBatchNorm2d into the 1x1 conv weights (host side, zero kernel cost):
    #   scale = w*rsqrt(rv+eps); bias = b - rm*scale
    #   conv(x*scale + bias) = x @ (scale[:,None]*W) + (conv_b + bias @ W)
    scale = params["bn_w"] * jax.lax.rsqrt(params["bn_rv"] + 1e-5)      # (CB,)
    bias = params["bn_b"] - params["bn_rm"] * scale                     # (CB,)
    wc = scale[:, None] * params["conv_w"]                              # (CB, HIDDEN)
    bc = params["conv_b"] + bias @ params["conv_w"]                     # (1, HIDDEN)

    # Lane-dense zero-padding: HIDDEN -> HP, VOCAB -> VP (extra rows/cols are exact zeros).
    wc = jnp.pad(wc, ((0, 0), (0, HP - HIDDEN)))
    bc = jnp.pad(bc, ((0, 0), (0, HP - HIDDEN)))
    wl = jnp.pad(params["lin_w"], ((0, 0), (0, HP - HIDDEN)))
    bl = jnp.pad(params["lin_b"], ((0, 0), (0, HP - HIDDEN)))
    w1 = jnp.pad(params["w1"], ((0, HP - HIDDEN), (0, 0)))
    w3 = jnp.pad(params["w3"], ((0, 0), (0, VP - VOCAB)))
    b3 = jnp.pad(params["b3"], ((0, 0), (0, VP - VOCAB)))

    # TODO(synk): pickle-loaded object features replaced by the obj_feats input.
    obj = jnp.squeeze(obj_feats, 2).reshape(B * N_OBJ, OBJ_DIM)

    # TODO(synk): mask = F.interpolate(m, size=feat.shape[-2:]) and
    # pos_emb = multi_pos_embeding only feed the external `transformer`
    # (stand-in: identity), so they are not materialized here.
    del mask_img, multi_pos_embedding

    out_flat = caption_fused(feat, obj, wc, bc, wl, bl,
                             w1, params["b1"], params["w2"], params["b2"],
                             w3, b3)                                    # (ROWS, VP)

    # Un-pad and restore the (B, SEQ, VOCAB) layout (image tokens then object tokens).
    out_feat = out_flat[:B * HW].reshape(B, HW, VP)
    out_obj = out_flat[B * HW:B * HW + B * N_OBJ].reshape(B, N_OBJ, VP)
    out = jnp.concatenate([out_feat, out_obj], axis=1)[:, :, :VOCAB]    # (B, SEQ, VOCAB)
    return out


# -------------------------- deterministic param init -------------------------
def init_params(key):
    ks = jax.random.split(key, 8)
    s = 0.02
    return {
        # FrozenBatchNorm2d buffers (per its __init__: ones/zeros)
        "bn_w": jnp.ones((CB,), jnp.float32),
        "bn_b": jnp.zeros((CB,), jnp.float32),
        "bn_rm": jnp.zeros((CB,), jnp.float32),
        "bn_rv": jnp.ones((CB,), jnp.float32),
        # input_proj = Conv2d(CB, HIDDEN, kernel_size=1)  (stored as (CB, HIDDEN))
        "conv_w": s * jax.random.normal(ks[0], (CB, HIDDEN), jnp.float32),
        "conv_b": s * jax.random.normal(ks[1], (1, HIDDEN), jnp.float32),
        # self.linear = nn.Linear(1024, hidden_dim)
        "lin_w": s * jax.random.normal(ks[2], (OBJ_DIM, HIDDEN), jnp.float32),
        "lin_b": s * jax.random.normal(ks[3], (1, HIDDEN), jnp.float32),
        # MLP(hidden_dim, 512, vocab_size, 3)
        "w1": s * jax.random.normal(ks[4], (HIDDEN, MLP_HID), jnp.float32),
        "b1": s * jax.random.normal(ks[5], (1, MLP_HID), jnp.float32),
        "w2": s * jax.random.normal(ks[6], (MLP_HID, MLP_HID), jnp.float32),
        "b2": jnp.zeros((1, MLP_HID), jnp.float32),
        "w3": s * jax.random.normal(ks[7], (MLP_HID, VOCAB), jnp.float32),
        "b3": jnp.zeros((1, VOCAB), jnp.float32),
        # multi_pos_embeding = nn.Parameter(torch.zeros(batch, seq, hidden))
        "pos": jnp.zeros((B, SEQ, HIDDEN), jnp.float32),
    }


# ------------------------------ pure-JAX reference ----------------------------
def reference(params, feat_nchw, obj_feats):
    hp = jax.lax.Precision.HIGHEST
    feat = jnp.transpose(feat_nchw, (0, 2, 3, 1)).reshape(B, HW, CB)
    scale = params["bn_w"] * jax.lax.rsqrt(params["bn_rv"] + 1e-5)
    bias = params["bn_b"] - params["bn_rm"] * scale
    fp = jnp.dot(feat * scale + bias, params["conv_w"], precision=hp) + params["conv_b"]
    op = jnp.dot(jnp.squeeze(obj_feats, 2), params["lin_w"], precision=hp) + params["lin_b"]
    h = jnp.concatenate([fp, op], axis=1)
    h = jnp.maximum(jnp.dot(h, params["w1"], precision=hp) + params["b1"], 0.0)
    h = jnp.maximum(jnp.dot(h, params["w2"], precision=hp) + params["b2"], 0.0)
    return jnp.dot(h, params["w3"], precision=hp) + params["b3"]


# ----------------------------------- main ------------------------------------
if __name__ == "__main__":
    key = jax.random.PRNGKey(0)
    k_param, k_feat, k_obj, k_mask = jax.random.split(key, 4)

    params = init_params(k_param)
    feat_nchw = jax.random.normal(k_feat, (B, CB, HF, WF), jnp.float32)
    obj_feats = jax.random.normal(k_obj, (B, N_OBJ, 1, OBJ_DIM), jnp.float32)
    mask_img = jax.random.bernoulli(k_mask, 0.2, (B, H_IMG, W_IMG))

    out = caption_forward(params, feat_nchw, mask_img, obj_feats, params["pos"])
    out = jax.block_until_ready(out)
    assert out.shape == (B, SEQ, VOCAB), out.shape

    # Kernel matmuls use the MXU default f32 path; reference uses HIGHEST precision,
    # hence the modest tolerance.
    ref = reference(params, feat_nchw, obj_feats)
    assert jnp.allclose(out, ref, rtol=2e-2, atol=2e-2), float(jnp.max(jnp.abs(out - ref)))

    print("KERNEL_OK")
</pallas_src>

<mosaic_0001>
module attributes {stable_mosaic.version = 11 : i64} {
  func.func @caption_fused_kernel(%arg0: memref<72x128xf32, #tpu.memory_space<vmem>>, %arg1: memref<20x1024xf32, #tpu.memory_space<vmem>>, %arg2: memref<128x128xf32, #tpu.memory_space<vmem>>, %arg3: memref<1x128xf32, #tpu.memory_space<vmem>>, %arg4: memref<1024x128xf32, #tpu.memory_space<vmem>>, %arg5: memref<1x128xf32, #tpu.memory_space<vmem>>, %arg6: memref<128x512xf32, #tpu.memory_space<vmem>>, %arg7: memref<1x512xf32, #tpu.memory_space<vmem>>, %arg8: memref<512x512xf32, #tpu.memory_space<vmem>>, %arg9: memref<1x512xf32, #tpu.memory_space<vmem>>, %arg10: memref<512x128xf32, #tpu.memory_space<vmem>>, %arg11: memref<1x128xf32, #tpu.memory_space<vmem>>, %arg12: memref<96x128xf32, #tpu.memory_space<vmem>>, %arg13: memref<96x128xf32, #tpu.memory_space<vmem>>) attributes {dimension_semantics = [], scalar_prefetch = 0 : i64, scratch_operands = 1 : i64, tpu.core_type = #tpu.core_type<tc>} {
    %cst = arith.constant 0.000000e+00 : f32
    %0 = vector.broadcast %cst : f32 to vector<96x128xf32>
    %c0 = arith.constant 0 : index
    %c0_0 = arith.constant 0 : index
    %1 = vector.load %arg13[%c0, %c0_0] : memref<96x128xf32, #tpu.memory_space<vmem>>, vector<96x128xf32>
    tpu.vector_store %arg13[%c0, %c0_0], %0 {strides = array<i32>} : memref<96x128xf32, #tpu.memory_space<vmem>>, vector<96x128xf32>,
    %c0_1 = arith.constant 0 : index
    %c0_2 = arith.constant 0 : index
    %2 = vector.load %arg0[%c0_1, %c0_2] : memref<72x128xf32, #tpu.memory_space<vmem>>, vector<72x128xf32>
    %c0_3 = arith.constant 0 : index
    %c0_4 = arith.constant 0 : index
    %3 = vector.load %arg2[%c0_3, %c0_4] : memref<128x128xf32, #tpu.memory_space<vmem>>, vector<128x128xf32>
    %cst_5 = arith.constant dense<0.000000e+00> : vector<72x128xf32>
    %4 = tpu.matmul %2, %3, %cst_5 {dimension_numbers = #tpu.dot_dimension_numbers<[1], [0], [0], [1], [0, 0, 1, 1], [], []>} : vector<72x128xf32>, vector<128x128xf32>, vector<72x128xf32> -> vector<72x128xf32>
    %c0_6 = arith.constant 0 : index
    %c0_7 = arith.constant 0 : index
    %5 = vector.load %arg3[%c0_6, %c0_7] : memref<1x128xf32, #tpu.memory_space<vmem>>, vector<1x128xf32>
    %6 = vector.broadcast %5 : vector<1x128xf32> to vector<72x128xf32>
    %7 = arith.addf %4, %6 : vector<72x128xf32>
    %c0_8 = arith.constant 0 : index
    %c0_9 = arith.constant 0 : index
    %8 = vector.load %arg1[%c0_8, %c0_9] : memref<20x1024xf32, #tpu.memory_space<vmem>>, vector<20x1024xf32>
    %c0_10 = arith.constant 0 : index
    %c0_11 = arith.constant 0 : index
    %9 = vector.load %arg4[%c0_10, %c0_11] : memref<1024x128xf32, #tpu.memory_space<vmem>>, vector<1024x128xf32>
    %cst_12 = arith.constant dense<0.000000e+00> : vector<20x128xf32>
    %10 = tpu.matmul %8, %9, %cst_12 {dimension_numbers = #tpu.dot_dimension_numbers<[1], [0], [0], [1], [0, 0, 1, 1], [], []>} : vector<20x1024xf32>, vector<1024x128xf32>, vector<20x128xf32> -> vector<20x128xf32>
    %c0_13 = arith.constant 0 : index
    %c0_14 = arith.constant 0 : index
    %11 = vector.load %arg5[%c0_13, %c0_14] : memref<1x128xf32, #tpu.memory_space<vmem>>, vector<1x128xf32>
    %12 = vector.broadcast %11 : vector<1x128xf32> to vector<20x128xf32>
    %13 = arith.addf %10, %12 : vector<20x128xf32>
    %c0_15 = arith.constant 0 : index
    %c0_16 = arith.constant 0 : index
    %14 = vector.load %arg13[%c0_15, %c0_16] : memref<96x128xf32, #tpu.memory_space<vmem>>, vector<72x128xf32>
    tpu.vector_store %arg13[%c0_15, %c0_16], %7 {strides = array<i32>} : memref<96x128xf32, #tpu.memory_space<vmem>>, vector<72x128xf32>,
    %c72 = arith.constant 72 : index
    %c0_17 = arith.constant 0 : index
    %15 = vector.load %arg13[%c72, %c0_17] : memref<96x128xf32, #tpu.memory_space<vmem>>, vector<20x128xf32>
    tpu.vector_store %arg13[%c72, %c0_17], %13 {strides = array<i32>} : memref<96x128xf32, #tpu.memory_space<vmem>>, vector<20x128xf32>,
    %c0_18 = arith.constant 0 : index
    %c0_19 = arith.constant 0 : index
    %16 = vector.load %arg13[%c0_18, %c0_19] : memref<96x128xf32, #tpu.memory_space<vmem>>, vector<96x128xf32>
    %c0_20 = arith.constant 0 : index
    %c0_21 = arith.constant 0 : index
    %17 = vector.load %arg6[%c0_20, %c0_21] : memref<128x512xf32, #tpu.memory_space<vmem>>, vector<128x512xf32>
    %cst_22 = arith.constant dense<0.000000e+00> : vector<96x512xf32>
    %18 = tpu.matmul %16, %17, %cst_22 {dimension_numbers = #tpu.dot_dimension_numbers<[1], [0], [0], [1], [0, 0, 1, 1], [], []>} : vector<96x128xf32>, vector<128x512xf32>, vector<96x512xf32> -> vector<96x512xf32>
    %c0_23 = arith.constant 0 : index
    %c0_24 = arith.constant 0 : index
    %19 = vector.load %arg7[%c0_23, %c0_24] : memref<1x512xf32, #tpu.memory_space<vmem>>, vector<1x512xf32>
    %20 = vector.broadcast %19 : vector<1x512xf32> to vector<96x512xf32>
    %21 = arith.addf %18, %20 : vector<96x512xf32>
    %cst_25 = arith.constant 0.000000e+00 : f32
    %22 = vector.broadcast %cst_25 : f32 to vector<96x512xf32>
    %23 = arith.maximumf %21, %22 : vector<96x512xf32>
    %c0_26 = arith.constant 0 : index
    %c0_27 = arith.constant 0 : index
    %24 = vector.load %arg8[%c0_26, %c0_27] : memref<512x512xf32, #tpu.memory_space<vmem>>, vector<512x512xf32>
    %cst_28 = arith.constant dense<0.000000e+00> : vector<96x512xf32>
    %25 = tpu.matmul %23, %24, %cst_28 {dimension_numbers = #tpu.dot_dimension_numbers<[1], [0], [0], [1], [0, 0, 1, 1], [], []>} : vector<96x512xf32>, vector<512x512xf32>, vector<96x512xf32> -> vector<96x512xf32>
    %c0_29 = arith.constant 0 : index
    %c0_30 = arith.constant 0 : index
    %26 = vector.load %arg9[%c0_29, %c0_30] : memref<1x512xf32, #tpu.memory_space<vmem>>, vector<1x512xf32>
    %27 = vector.broadcast %26 : vector<1x512xf32> to vector<96x512xf32>
    %28 = arith.addf %25, %27 : vector<96x512xf32>
    %cst_31 = arith.constant 0.000000e+00 : f32
    %29 = vector.broadcast %cst_31 : f32 to vector<96x512xf32>
    %30 = arith.maximumf %28, %29 : vector<96x512xf32>
    %c0_32 = arith.constant 0 : index
    %c0_33 = arith.constant 0 : index
    %31 = vector.load %arg10[%c0_32, %c0_33] : memref<512x128xf32, #tpu.memory_space<vmem>>, vector<512x128xf32>
    %cst_34 = arith.constant dense<0.000000e+00> : vector<96x128xf32>
    %32 = tpu.matmul %30, %31, %cst_34 {dimension_numbers = #tpu.dot_dimension_numbers<[1], [0], [0], [1], [0, 0, 1, 1], [], []>} : vector<96x512xf32>, vector<512x128xf32>, vector<96x128xf32> -> vector<96x128xf32>
    %c0_35 = arith.constant 0 : index
    %c0_36 = arith.constant 0 : index
    %33 = vector.load %arg11[%c0_35, %c0_36] : memref<1x128xf32, #tpu.memory_space<vmem>>, vector<1x128xf32>
    %34 = vector.broadcast %33 : vector<1x128xf32> to vector<96x128xf32>
    %35 = arith.addf %32, %34 : vector<96x128xf32>
    %c0_37 = arith.constant 0 : index
    %c0_38 = arith.constant 0 : index
    %36 = vector.load %arg12[%c0_37, %c0_38] : memref<96x128xf32, #tpu.memory_space<vmem>>, vector<96x128xf32>
    tpu.vector_store %arg12[%c0_37, %c0_38], %35 {strides = array<i32>} : memref<96x128xf32, #tpu.memory_space<vmem>>, vector<96x128xf32>,
    return
  }
}

</mosaic_0001>

<llo_original>
// kernel: squeeze.1
$region0: #{squeeze.1}
  %s0 = inlined_call_operand.vmem [shape: f32[2,10,1024], index: 0, kind: input, shape index: {}]
  %s1 = inlined_call_operand.vmem [shape: f32[20,1024], index: 1, kind: output, shape index: {}]
  %v2 = vld [vmem:[%s0] sm:$0xff]
  %3 = vst [vmem:[%s1] sm:$0xff] %v2
  %s4 = scalar_lea.vmem %s0, 8
  %v5 = vld [vmem:[%s4] sm:$0xff]
  %s6 = scalar_lea.vmem %s1, 8
  %7 = vst [vmem:[%s6] sm:$0xff] %v5
  %s8 = scalar_lea.vmem %s0, 16
  %v9 = vld [vmem:[%s8] sm:$0xff]
  %s10 = scalar_lea.vmem %s1, 16
  %11 = vst [vmem:[%s10] sm:$0xff] %v9
  %s12 = scalar_lea.vmem %s0, 24
  %v13 = vld [vmem:[%s12] sm:$0xff]
  %s14 = scalar_lea.vmem %s1, 24
  %15 = vst [vmem:[%s14] sm:$0xff] %v13
  %s16 = scalar_lea.vmem %s0, 32
  %v17 = vld [vmem:[%s16] sm:$0xff]
  %s18 = scalar_lea.vmem %s1, 32
  %19 = vst [vmem:[%s18] sm:$0xff] %v17
  %s20 = scalar_lea.vmem %s0, 40
  %v21 = vld [vmem:[%s20] sm:$0xff]
  %s22 = scalar_lea.vmem %s1, 40
  %23 = vst [vmem:[%s22] sm:$0xff] %v21
  %s24 = scalar_lea.vmem %s0, 48
  %v25 = vld [vmem:[%s24] sm:$0xff]
  %s26 = scalar_lea.vmem %s1, 48
  %27 = vst [vmem:[%s26] sm:$0xff] %v25
  %s28 = scalar_lea.vmem %s0, 56
  %v29 = vld [vmem:[%s28] sm:$0xff]
  %s30 = scalar_lea.vmem %s1, 56
  %31 = vst [vmem:[%s30] sm:$0xff] %v29
  %s32 = scalar_lea.vmem %s0, 64
  %v33 = vld [vmem:[%s32] sm:$0x3]
  %s34 = scalar_lea.vmem %s1, 64
  %35 = vst [vmem:[%s34] sm:$0x3] %v33
  %s36 = scalar_lea.vmem %s0, 72
  %v37 = vld [vmem:[%s36] sm:$0x3]
  %s38 = scalar_lea.vmem %s1, 72
  %39 = vst [vmem:[%s38] sm:$0x3] %v37
  %s40 = scalar_lea.vmem %s0, 80
  %v41 = vld [vmem:[%s40] sm:$0x3]
  %s42 = scalar_lea.vmem %s1, 80
  %43 = vst [vmem:[%s42] sm:$0x3] %v41
  %s44 = scalar_lea.vmem %s0, 88
  %v45 = vld [vmem:[%s44] sm:$0x3]
  %s46 = scalar_lea.vmem %s1, 88
  %47 = vst [vmem:[%s46] sm:$0x3] %v45
  %s48 = scalar_lea.vmem %s0, 96
  %v49 = vld [vmem:[%s48] sm:$0x3]
  %s50 = scalar_lea.vmem %s1, 96
  %51 = vst [vmem:[%s50] sm:$0x3] %v49
  %s52 = scalar_lea.vmem %s0, 104
  %v53 = vld [vmem:[%s52] sm:$0x3]
  %s54 = scalar_lea.vmem %s1, 104
  %55 = vst [vmem:[%s54] sm:$0x3] %v53
  %s56 = scalar_lea.vmem %s0, 112
  %v57 = vld [vmem:[%s56] sm:$0x3]
  %s58 = scalar_lea.vmem %s1, 112
  %59 = vst [vmem:[%s58] sm:$0x3] %v57
  %s60 = scalar_lea.vmem %s0, 120
  %v61 = vld [vmem:[%s60] sm:$0x3]
  %s62 = scalar_lea.vmem %s1, 120
  %63 = vst [vmem:[%s62] sm:$0x3] %v61
  %s64 = scalar_lea.vmem %s0, 128
  %v65 = vld [vmem:[%s64] sm:$0xff]
  %s66 = scalar_lea.vmem %s1, 66
  %67 = vst [vmem:[%s66] sm:$0x3f] %v65
  %s68 = scalar_lea.vmem %s1, 122
  %69 = vst [vmem:[%s68] sm:$0xc0] %v65
  %s70 = scalar_lea.vmem %s0, 136
  %v71 = vld [vmem:[%s70] sm:$0xff]
  %s72 = scalar_lea.vmem %s1, 74
  %73 = vst [vmem:[%s72] sm:$0x3f] %v71
  %s74 = scalar_lea.vmem %s1, 130
  %75 = vst [vmem:[%s74] sm:$0xc0] %v71
  %s76 = scalar_lea.vmem %s0, 144
  %v77 = vld [vmem:[%s76] sm:$0xff]
  %s78 = scalar_lea.vmem %s1, 82
  %79 = vst [vmem:[%s78] sm:$0x3f] %v77
  %s80 = scalar_lea.vmem %s1, 138
  %81 = vst [vmem:[%s80] sm:$0xc0] %v77
  %s82 = scalar_lea.vmem %s0, 152
  %v83 = vld [vmem:[%s82] sm:$0xff]
  %s84 = scalar_lea.vmem %s1, 90
  %85 = vst [vmem:[%s84] sm:$0x3f] %v83
  %s86 = scalar_lea.vmem %s1, 146
  %87 = vst [vmem:[%s86] sm:$0xc0] %v83
  %s88 = scalar_lea.vmem %s0, 160
  %v89 = vld [vmem:[%s88] sm:$0xff]
  %s90 = scalar_lea.vmem %s1, 98
  %91 = vst [vmem:[%s90] sm:$0x3f] %v89
  %s92 = scalar_lea.vmem %s1, 154
  %93 = vst [vmem:[%s92] sm:$0xc0] %v89
  %s94 = scalar_lea.vmem %s0, 168
  %v95 = vld [vmem:[%s94] sm:$0xff]
  %s96 = scalar_lea.vmem %s1, 106
  %97 = vst [vmem:[%s96] sm:$0x3f] %v95
  %s98 = scalar_lea.vmem %s1, 162
  %99 = vst [vmem:[%s98] sm:$0xc0] %v95
  %s100 = scalar_lea.vmem %s0, 176
  %v101 = vld [vmem:[%s100] sm:$0xff]
  %s102 = scalar_lea.vmem %s1, 114
  %103 = vst [vmem:[%s102] sm:$0x3f] %v101
  %s104 = scalar_lea.vmem %s1, 170
  %105 = vst [vmem:[%s104] sm:$0xc0] %v101
  %s106 = scalar_lea.vmem %s0, 184
  %v107 = vld [vmem:[%s106] sm:$0xff]
  %s108 = scalar_lea.vmem %s1, 122
  %109 = vst [vmem:[%s108] sm:$0x3f] %v107
  %s110 = scalar_lea.vmem %s1, 178
  %111 = vst [vmem:[%s110] sm:$0xc0] %v107
  %s112 = scalar_lea.vmem %s0, 192
  %v113 = vld [vmem:[%s112] sm:$0x3]
  %s114 = scalar_lea.vmem %s1, 130
  %115 = vst [vmem:[%s114] sm:$0x3] %v113
  %s116 = scalar_lea.vmem %s0, 200
  %v117 = vld [vmem:[%s116] sm:$0x3]
  %s118 = scalar_lea.vmem %s1, 138
  %119 = vst [vmem:[%s118] sm:$0x3] %v117
  %s120 = scalar_lea.vmem %s0, 208
  %v121 = vld [vmem:[%s120] sm:$0x3]
  %s122 = scalar_lea.vmem %s1, 146
  %123 = vst [vmem:[%s122] sm:$0x3] %v121
  %s124 = scalar_lea.vmem %s0, 216
  %v125 = vld [vmem:[%s124] sm:$0x3]
  %s126 = scalar_lea.vmem %s1, 154
  %127 = vst [vmem:[%s126] sm:$0x3] %v125
  %s128 = scalar_lea.vmem %s0, 224
  %v129 = vld [vmem:[%s128] sm:$0x3]
  %s130 = scalar_lea.vmem %s1, 162
  %131 = vst [vmem:[%s130] sm:$0x3] %v129
  %s132 = scalar_lea.vmem %s0, 232
  %v133 = vld [vmem:[%s132] sm:$0x3]
  %s134 = scalar_lea.vmem %s1, 170
  %135 = vst [vmem:[%s134] sm:$0x3] %v133
  %s136 = scalar_lea.vmem %s0, 240
  %v137 = vld [vmem:[%s136] sm:$0x3]
  %s138 = scalar_lea.vmem %s1, 178
  %139 = vst [vmem:[%s138] sm:$0x3] %v137
  %s140 = scalar_lea.vmem %s0, 248
  %v141 = vld [vmem:[%s140] sm:$0x3]
  %s142 = scalar_lea.vmem %s1, 186
  %143 = vst [vmem:[%s142] sm:$0x3] %v141

// kernel: caption_forward.1
$region0: #{caption_forward.1}
  #allocation0 [shape = 'u32[]', space=smem, size = 0x4, offset = 0x4, fixed_abs, tag = 'smem constant byte address 0x4 - core index']
  #allocation1 [shape = 'u32[144,128]{1,0:T(1,128)}', space=vmem, size = 0x12000, scoped, tag = 'internal scratch']
  #allocation2 [shape = 'f32[96,128]{1,0:T(8,128)}', space=vmem, size = 0xc000, scoped, tag = 'scratch operand']
  %s0 = inlined_call_operand.vmem [shape: f32[72,128], index: 0, kind: input, shape index: {}]
  %s1 = inlined_call_operand.vmem [shape: f32[20,1024], index: 1, kind: input, shape index: {}]
  %s2 = inlined_call_operand.vmem [shape: f32[128,128], index: 2, kind: input, shape index: {}]
  %s3 = inlined_call_operand.vmem [shape: f32[1,128], index: 3, kind: input, shape index: {}]
  %s4 = inlined_call_operand.vmem [shape: f32[1024,128], index: 4, kind: input, shape index: {}]
  %s5 = inlined_call_operand.vmem [shape: f32[1,128], index: 5, kind: input, shape index: {}]
  %s6 = inlined_call_operand.vmem [shape: f32[128,512], index: 6, kind: input, shape index: {}]
  %s7 = inlined_call_operand.vmem [shape: f32[1,512], index: 7, kind: input, shape index: {}]
  %s8 = inlined_call_operand.vmem [shape: f32[512,512], index: 8, kind: input, shape index: {}]
  %s9 = inlined_call_operand.vmem [shape: f32[1,512], index: 9, kind: input, shape index: {}]
  %s10 = inlined_call_operand.vmem [shape: f32[512,128], index: 10, kind: input, shape index: {}]
  %s11 = inlined_call_operand.vmem [shape: f32[1,128], index: 11, kind: input, shape index: {}]
  %s12 = inlined_call_operand.vmem [shape: f32[96,128], index: 12, kind: output, shape index: {}]
  %s13 = sld [smem:[#allocation0]]
  $region58: #{caption_forward.1} parent=0
    _
  %s15 = ssub.s32 1, %s13
  %s16 = scalar_select 0, %s15, %s13
  // Predicated region
  $region2: #{caption_forward.1} parent=0 // pred_check
    _
  $region3: #{caption_forward.1} parent=0 // pred_check_branch
    %18 = sbr.rel (0) target = $region5
  $region4: #{caption_forward.1} parent=0 // pred_region
    _
  $region5: #{caption_forward.1} parent=0 // pred_fallthru
    _
  // Predicated region
  $region6: #{caption_forward.1} parent=0 // pred_check
    _
  $region7: #{caption_forward.1} parent=0 // pred_check_branch
    %20 = sbr.rel (0) target = $region9
  $region8: #{caption_forward.1} parent=0 // pred_region
    _
  $region9: #{caption_forward.1} parent=0 // pred_fallthru
    _
  // Predicated region
  $region10: #{caption_forward.1} parent=0 // pred_check
    _
  $region11: #{caption_forward.1} parent=0 // pred_check_branch
    %22 = sbr.rel (0) target = $region13
  $region12: #{caption_forward.1} parent=0 // pred_region
    _
  $region13: #{caption_forward.1} parent=0 // pred_fallthru
    _
  // Predicated region
  $region14: #{caption_forward.1} parent=0 // pred_check
    _
  $region15: #{caption_forward.1} parent=0 // pred_check_branch
    %24 = sbr.rel (0) target = $region17
  $region16: #{caption_forward.1} parent=0 // pred_region
    _
  $region17: #{caption_forward.1} parent=0 // pred_fallthru
    _
  // Predicated region
  $region18: #{caption_forward.1} parent=0 // pred_check
    _
  $region19: #{caption_forward.1} parent=0 // pred_check_branch
    %26 = sbr.rel (0) target = $region21
  $region20: #{caption_forward.1} parent=0 // pred_region
    _
  $region21: #{caption_forward.1} parent=0 // pred_fallthru
    _
  // Predicated region
  $region22: #{caption_forward.1} parent=0 // pred_check
    _
  $region23: #{caption_forward.1} parent=0 // pred_check_branch
    %28 = sbr.rel (0) target = $region25
  $region24: #{caption_forward.1} parent=0 // pred_region
    _
  $region25: #{caption_forward.1} parent=0 // pred_fallthru
    _
  // Predicated region
  $region26: #{caption_forward.1} parent=0 // pred_check
    _
  $region27: #{caption_forward.1} parent=0 // pred_check_branch
    %30 = sbr.rel (0) target = $region29
  $region28: #{caption_forward.1} parent=0 // pred_region
    _
  $region29: #{caption_forward.1} parent=0 // pred_fallthru
    _
  // Predicated region
  $region30: #{caption_forward.1} parent=0 // pred_check
    _
  $region31: #{caption_forward.1} parent=0 // pred_check_branch
    %32 = sbr.rel (0) target = $region33
  $region32: #{caption_forward.1} parent=0 // pred_region
    _
  $region33: #{caption_forward.1} parent=0 // pred_fallthru
    _
  // Predicated region
  $region34: #{caption_forward.1} parent=0 // pred_check
    _
  $region35: #{caption_forward.1} parent=0 // pred_check_branch
    %34 = sbr.rel (0) target = $region37
  $region36: #{caption_forward.1} parent=0 // pred_region
    _
  $region37: #{caption_forward.1} parent=0 // pred_fallthru
    _
  // Predicated region
  $region38: #{caption_forward.1} parent=0 // pred_check
    _
  $region39: #{caption_forward.1} parent=0 // pred_check_branch
    %36 = sbr.rel (0) target = $region41
  $region40: #{caption_forward.1} parent=0 // pred_region
    _
  $region41: #{caption_forward.1} parent=0 // pred_fallthru
    _
  // Predicated region
  $region42: #{caption_forward.1} parent=0 // pred_check
    _
  $region43: #{caption_forward.1} parent=0 // pred_check_branch
    %38 = sbr.rel (0) target = $region45
  $region44: #{caption_forward.1} parent=0 // pred_region
    _
  $region45: #{caption_forward.1} parent=0 // pred_fallthru
    _
  // Predicated region
  $region46: #{caption_forward.1} parent=0 // pred_check
    _
  $region47: #{caption_forward.1} parent=0 // pred_check_branch
    %40 = sbr.rel (0) target = $region49
  $region48: #{caption_forward.1} parent=0 // pred_region
    _
  $region49: #{caption_forward.1} parent=0 // pred_fallthru
    _
  %41 = vst [vmem:[#allocation2] sm:$0xff] 0.0
  %42 = vst [vmem:[#allocation2 + $0x8] sm:$0xff] 0.0
  %43 = vst [vmem:[#allocation2 + $0x10] sm:$0xff] 0.0
  %44 = vst [vmem:[#allocation2 + $0x18] sm:$0xff] 0.0
  %45 = vst [vmem:[#allocation2 + $0x20] sm:$0xff] 0.0
  %46 = vst [vmem:[#allocation2 + $0x28] sm:$0xff] 0.0
  %47 = vst [vmem:[#allocation2 + $0x30] sm:$0xff] 0.0
  %48 = vst [vmem:[#allocation2 + $0x38] sm:$0xff] 0.0
  %49 = vst [vmem:[#allocation2 + $0x40] sm:$0xff] 0.0
  %50 = vst [vmem:[#allocation2 + $0x48] sm:$0xff] 0.0
  %51 = vst [vmem:[#allocation2 + $0x50] sm:$0xff] 0.0
  %52 = vst [vmem:[#allocation2 + $0x58] sm:$0xff] 0.0
  %v53 = vld [vmem:[%s0] sm:$0xff]
  %v54 = vld [vmem:[%s0 + $0x8] sm:$0xff]
  %v55 = vld [vmem:[%s0 + $0x10] sm:$0xff]
  %v56 = vld [vmem:[%s0 + $0x18] sm:$0xff]
  %v57 = vld [vmem:[%s0 + $0x20] sm:$0xff]
  %v58 = vld [vmem:[%s0 + $0x28] sm:$0xff]
  %v59 = vld [vmem:[%s0 + $0x30] sm:$0xff]
  %v60 = vld [vmem:[%s0 + $0x38] sm:$0xff]
  %v61 = vld [vmem:[%s0 + $0x40] sm:$0xff]
  %v62 = vld [vmem:[%s2] sm:$0xff]
  %v63 = vld [vmem:[%s2 + $0x8] sm:$0xff]
  %v64 = vld [vmem:[%s2 + $0x10] sm:$0xff]
  %v65 = vld [vmem:[%s2 + $0x18] sm:$0xff]
  %v66 = vld [vmem:[%s2 + $0x20] sm:$0xff]
  %v67 = vld [vmem:[%s2 + $0x28] sm:$0xff]
  %v68 = vld [vmem:[%s2 + $0x30] sm:$0xff]
  %v69 = vld [vmem:[%s2 + $0x38] sm:$0xff]
  %v70 = vld [vmem:[%s2 + $0x40] sm:$0xff]
  %v71 = vld [vmem:[%s2 + $0x48] sm:$0xff]
  %v72 = vld [vmem:[%s2 + $0x50] sm:$0xff]
  %v73 = vld [vmem:[%s2 + $0x58] sm:$0xff]
  %v74 = vld [vmem:[%s2 + $0x60] sm:$0xff]
  %v75 = vld [vmem:[%s2 + $0x68] sm:$0xff]
  %v76 = vld [vmem:[%s2 + $0x70] sm:$0xff]
  %v77 = vld [vmem:[%s2 + $0x78] sm:$0xff]
  %v78 = vld [vmem:[%s3] sm:$0x1]
  %v80 = vlaneseq
  %v81 = vshrl.u32 %v80, 7
  %v82 = vsub.s32 0, %v81
  %v83 = vrot.slane %v78, %v82
  %85 = vmatprep.subr.mxu0 0.0
  %86 = vmatpush1.msra.mxu0 %v77
  %87 = vmatprep.subr.mxu0 0.0
  %88 = vmatpush1.msra.mxu0 %v76
  %89 = vmatprep.subr.mxu0 0.0
  %90 = vmatpush1.msra.mxu0 %v75
  %91 = vmatprep.subr.mxu0 0.0
  %92 = vmatpush1.msra.mxu0 %v74
  %93 = vmatprep.subr.mxu0 0.0
  %94 = vmatpush1.msra.mxu0 %v73
  %95 = vmatprep.subr.mxu0 0.0
  %96 = vmatpush1.msra.mxu0 %v72
  %97 = vmatprep.subr.mxu0 0.0
  %98 = vmatpush1.msra.mxu0 %v71
  %99 = vmatprep.subr.mxu0 0.0
  %100 = vmatpush1.msra.mxu0 %v70
  %101 = vmatprep.subr.mxu0 0.0
  %102 = vmatpush1.msra.mxu0 %v69
  %103 = vmatprep.subr.mxu0 0.0
  %104 = vmatpush1.msra.mxu0 %v68
  %105 = vmatprep.subr.mxu0 0.0
  %106 = vmatpush1.msra.mxu0 %v67
  %107 = vmatprep.subr.mxu0 0.0
  %108 = vmatpush1.msra.mxu0 %v66
  %109 = vmatprep.subr.mxu0 0.0
  %110 = vmatpush1.msra.mxu0 %v65
  %111 = vmatprep.subr.mxu0 0.0
  %112 = vmatpush1.msra.mxu0 %v64
  %113 = vmatprep.subr.mxu0 0.0
  %114 = vmatpush1.msra.mxu0 %v63
  %115 = vmatprep.subr.mxu0 0.0
  %116 = vmatpush1.msra.mxu0 %v62
  %117 = vmatprep.subr.mxu0 0.0
  %118 = vmatpush2.msra.mxu0 0.0
  %119 = vmatprep.subr.mxu0 0.0
  %120 = vmatpush2.msra.mxu0 0.0
  %121 = vmatprep.subr.mxu0 0.0
  %122 = vmatpush2.msra.mxu0 0.0
  %123 = vmatprep.subr.mxu0 0.0
  %124 = vmatpush2.msra.mxu0 0.0
  %125 = vmatprep.subr.mxu0 0.0
  %126 = vmatpush2.msra.mxu0 0.0
  %127 = vmatprep.subr.mxu0 0.0
  %128 = vmatpush2.msra.mxu0 0.0
  %129 = vmatprep.subr.mxu0 0.0
  %130 = vmatpush2.msra.mxu0 0.0
  %131 = vmatprep.subr.mxu0 0.0
  %132 = vmatpush2.msra.mxu0 0.0
  %133 = vmatprep.subr.mxu0 0.0
  %134 = vmatpush2.msra.mxu0 0.0
  %135 = vmatprep.subr.mxu0 0.0
  %136 = vmatpush2.msra.mxu0 0.0
  %137 = vmatprep.subr.mxu0 0.0
  %138 = vmatpush2.msra.mxu0 0.0
  %139 = vmatprep.subr.mxu0 0.0
  %140 = vmatpush2.msra.mxu0 0.0
  %141 = vmatprep.subr.mxu0 0.0
  %142 = vmatpush2.msra.mxu0 0.0
  %143 = vmatprep.subr.mxu0 0.0
  %144 = vmatpush2.msra.mxu0 0.0
  %145 = vmatprep.subr.mxu0 0.0
  %146 = vmatpush2.msra.mxu0 0.0
  %147 = vmatprep.subr.mxu0 0.0
  %148 = vmatpush2.msra.mxu0 0.0
  %149 = vmatprep.mubr.f32.mxu0 0.0
  %150 = vmatmul.mubr.f32.gmra.mxu0 %v53
  %v151 = vpop.f32.mrf.mxu0
  %v152 = vadd.f32 %v83, %v151
  %v153 = vpop.f32.mrf.mxu0
  %154 = vmatprep.mubr.f32.mxu0 0.0
  %155 = vmatmul.mubr.f32.gmra.mxu0 %v54
  %v156 = vpop.f32.mrf.mxu0
  %v157 = vadd.f32 %v83, %v156
  %v158 = vpop.f32.mrf.mxu0
  %159 = vmatprep.mubr.f32.mxu0 0.0
  %160 = vmatmul.mubr.f32.gmra.mxu0 %v55
  %v161 = vpop.f32.mrf.mxu0
  %v162 = vadd.f32 %v83, %v161
  %v163 = vpop.f32.mrf.mxu0
  %164 = vmatprep.mubr.f32.mxu0 0.0
  %165 = vmatmul.mubr.f32.gmra.mxu0 %v56
  %v166 = vpop.f32.mrf.mxu0
  %v167 = vadd.f32 %v83, %v166
  %v168 = vpop.f32.mrf.mxu0
  %169 = vmatprep.mubr.f32.mxu0 0.0
  %170 = vmatmul.mubr.f32.gmra.mxu0 %v57
  %v171 = vpop.f32.mrf.mxu0
  %v172 = vadd.f32 %v83, %v171
  %v173 = vpop.f32.mrf.mxu0
  %174 = vmatprep.mubr.f32.mxu0 0.0
  %175 = vmatmul.mubr.f32.gmra.mxu0 %v58
  %v176 = vpop.f32.mrf.mxu0
  %v177 = vadd.f32 %v83, %v176
  %v178 = vpop.f32.mrf.mxu0
  %179 = vmatprep.mubr.f32.mxu0 0.0
  %180 = vmatmul.mubr.f32.gmra.mxu0 %v59
  %v181 = vpop.f32.mrf.mxu0
  %v182 = vadd.f32 %v83, %v181
  %v183 = vpop.f32.mrf.mxu0
  %184 = vmatprep.mubr.f32.mxu0 0.0
  %185 = vmatmul.mubr.f32.gmra.mxu0 %v60
  %v186 = vpop.f32.mrf.mxu0
  %v187 = vadd.f32 %v83, %v186
  %v188 = vpop.f32.mrf.mxu0
  %189 = vmatprep.mubr.f32.mxu0 0.0
  %190 = vmatmul.mubr.f32.gmra.mxu0 %v61
  %v191 = vpop.f32.mrf.mxu0
  %v192 = vadd.f32 %v83, %v191
  %v193 = vpop.f32.mrf.mxu0
  %194 = vdwg.mxu0
  %v195 = vld [vmem:[%s1] sm:$0xff]
  %v196 = vld [vmem:[%s1 + $0x8] sm:$0xff]
  %v197 = vld [vmem:[%s1 + $0x10] sm:$0xff]
  %v198 = vld [vmem:[%s1 + $0x18] sm:$0xff]
  %v199 = vld [vmem:[%s1 + $0x20] sm:$0xff]
  %v200 = vld [vmem:[%s1 + $0x28] sm:$0xff]
  %v201 = vld [vmem:[%s1 + $0x30] sm:$0xff]
  %v202 = vld [vmem:[%s1 + $0x38] sm:$0xff]
  %v203 = vld [vmem:[%s1 + $0x40] sm:$0xff]
  %v204 = vld [vmem:[%s1 + $0x48] sm:$0xff]
  %v205 = vld [vmem:[%s1 + $0x50] sm:$0xff]
  %v206 = vld [vmem:[%s1 + $0x58] sm:$0xff]
  %v207 = vld [vmem:[%s1 + $0x60] sm:$0xff]
  %v208 = vld [vmem:[%s1 + $0x68] sm:$0xff]
  %v209 = vld [vmem:[%s1 + $0x70] sm:$0xff]
  %v210 = vld [vmem:[%s1 + $0x78] sm:$0xff]
  %v211 = vld [vmem:[%s1 + $0x80] sm:$0xf]
  %v212 = vld [vmem:[%s1 + $0x88] sm:$0xf]
  %v213 = vld [vmem:[%s1 + $0x90] sm:$0xf]
  %v214 = vld [vmem:[%s1 + $0x98] sm:$0xf]
  %v215 = vld [vmem:[%s1 + $0xa0] sm:$0xf]
  %v216 = vld [vmem:[%s1 + $0xa8] sm:$0xf]
  %v217 = vld [vmem:[%s1 + $0xb0] sm:$0xf]
  %v218 = vld [vmem:[%s1 + $0xb8] sm:$0xf]
  %v219 = vld [vmem:[%s4] sm:$0xff]
  %v220 = vld [vmem:[%s4 + $0x8] sm:$0xff]
  %v221 = vld [vmem:[%s4 + $0x10] sm:$0xff]
  %v222 = vld [vmem:[%s4 + $0x18] sm:$0xff]
  %v223 = vld [vmem:[%s4 + $0x20] sm:$0xff]
  %v224 = vld [vmem:[%s4 + $0x28] sm:$0xff]
  %v225 = vld [vmem:[%s4 + $0x30] sm:$0xff]
  %v226 = vld [vmem:[%s4 + $0x38] sm:$0xff]
  %v227 = vld [vmem:[%s4 + $0x40] sm:$0xff]
  %v228 = vld [vmem:[%s4 + $0x48] sm:$0xff]
  %v229 = vld [vmem:[%s4 + $0x50] sm:$0xff]
  %v230 = vld [vmem:[%s4 + $0x58] sm:$0xff]
  %v231 = vld [vmem:[%s4 + $0x60] sm:$0xff]
  %v232 = vld [vmem:[%s4 + $0x68] sm:$0xff]
  %v233 = vld [vmem:[%s4 + $0x70] sm:$0xff]
  %v234 = vld [vmem:[%s4 + $0x78] sm:$0xff]
  %v235 = vld [vmem:[%s4 + $0x80] sm:$0xff]
  %v236 = vld [vmem:[%s4 + $0x88] sm:$0xff]
  %v237 = vld [vmem:[%s4 + $0x90] sm:$0xff]
  %v238 = vld [vmem:[%s4 + $0x98] sm:$0xff]
  %v239 = vld [vmem:[%s4 + $0xa0] sm:$0xff]
  %v240 = vld [vmem:[%s4 + $0xa8] sm:$0xff]
  %v241 = vld [vmem:[%s4 + $0xb0] sm:$0xff]
  %v242 = vld [vmem:[%s4 + $0xb8] sm:$0xff]
  %v243 = vld [vmem:[%s4 + $0xc0] sm:$0xff]
  %v244 = vld [vmem:[%s4 + $0xc8] sm:$0xff]
  %v245 = vld [vmem:[%s4 + $0xd0] sm:$0xff]
  %v246 = vld [vmem:[%s4 + $0xd8] sm:$0xff]
  %v247 = vld [vmem:[%s4 + $0xe0] sm:$0xff]
  %v248 = vld [vmem:[%s4 + $0xe8] sm:$0xff]
  %v249 = vld [vmem:[%s4 + $0xf0] sm:$0xff]
  %v250 = vld [vmem:[%s4 + $0xf8] sm:$0xff]
  %v251 = vld [vmem:[%s4 + $0x100] sm:$0xff]
  %v252 = vld [vmem:[%s4 + $0x108] sm:$0xff]
  %v253 = vld [vmem:[%s4 + $0x110] sm:$0xff]
  %v254 = vld [vmem:[%s4 + $0x118] sm:$0xff]
  %v255 = vld [vmem:[%s4 + $0x120] sm:$0xff]
  %v256 = vld [vmem:[%s4 + $0x128] sm:$0xff]
  %v257 = vld [vmem:[%s4 + $0x130] sm:$0xff]
  %v258 = vld [vmem:[%s4 + $0x138] sm:$0xff]
  %v259 = vld [vmem:[%s4 + $0x140] sm:$0xff]
  %v260 = vld [vmem:[%s4 + $0x148] sm:$0xff]
  %v261 = vld [vmem:[%s4 + $0x150] sm:$0xff]
  %v262 = vld [vmem:[%s4 + $0x158] sm:$0xff]
  %v263 = vld [vmem:[%s4 + $0x160] sm:$0xff]
  %v264 = vld [vmem:[%s4 + $0x168] sm:$0xff]
  %v265 = vld [vmem:[%s4 + $0x170] sm:$0xff]
  %v266 = vld [vmem:[%s4 + $0x178] sm:$0xff]
  %v267 = vld [vmem:[%s4 + $0x180] sm:$0xff]
  %v268 = vld [vmem:[%s4 + $0x188] sm:$0xff]
  %v269 = vld [vmem:[%s4 + $0x190] sm:$0xff]
  %v270 = vld [vmem:[%s4 + $0x198] sm:$0xff]
  %v271 = vld [vmem:[%s4 + $0x1a0] sm:$0xff]
  %v272 = vld [vmem:[%s4 + $0x1a8] sm:$0xff]
  %v273 = vld [vmem:[%s4 + $0x1b0] sm:$0xff]
  %v274 = vld [vmem:[%s4 + $0x1b8] sm:$0xff]
  %v275 = vld [vmem:[%s4 + $0x1c0] sm:$0xff]
  %v276 = vld [vmem:[%s4 + $0x1c8] sm:$0xff]
  %v277 = vld [vmem:[%s4 + $0x1d0] sm:$0xff]
  %v278 = vld [vmem:[%s4 + $0x1d8] sm:$0xff]
  %v279 = vld [vmem:[%s4 + $0x1e0] sm:$0xff]
  %v280 = vld [vmem:[%s4 + $0x1e8] sm:$0xff]
  %v281 = vld [vmem:[%s4 + $0x1f0] sm:$0xff]
  %v282 = vld [vmem:[%s4 + $0x1f8] sm:$0xff]
  %v283 = vld [vmem:[%s4 + $0x200] sm:$0xff]
  %v284 = vld [vmem:[%s4 + $0x208] sm:$0xff]
  %v285 = vld [vmem:[%s4 + $0x210] sm:$0xff]
  %v286 = vld [vmem:[%s4 + $0x218] sm:$0xff]
  %v287 = vld [vmem:[%s4 + $0x220] sm:$0xff]
  %v288 = vld [vmem:[%s4 + $0x228] sm:$0xff]
  %v289 = vld [vmem:[%s4 + $0x230] sm:$0xff]
  %v290 = vld [vmem:[%s4 + $0x238] sm:$0xff]
  %v291 = vld [vmem:[%s4 + $0x240] sm:$0xff]
  %v292 = vld [vmem:[%s4 + $0x248] sm:$0xff]
  %v293 = vld [vmem:[%s4 + $0x250] sm:$0xff]
  %v294 = vld [vmem:[%s4 + $0x258] sm:$0xff]
  %v295 = vld [vmem:[%s4 + $0x260] sm:$0xff]
  %v296 = vld [vmem:[%s4 + $0x268] sm:$0xff]
  %v297 = vld [vmem:[%s4 + $0x270] sm:$0xff]
  %v298 = vld [vmem:[%s4 + $0x278] sm:$0xff]
  %v299 = vld [vmem:[%s4 + $0x280] sm:$0xff]
  %v300 = vld [vmem:[%s4 + $0x288] sm:$0xff]
  %v301 = vld [vmem:[%s4 + $0x290] sm:$0xff]
  %v302 = vld [vmem:[%s4 + $0x298] sm:$0xff]
  %v303 = vld [vmem:[%s4 + $0x2a0] sm:$0xff]
  %v304 = vld [vmem:[%s4 + $0x2a8] sm:$0xff]
  %v305 = vld [vmem:[%s4 + $0x2b0] sm:$0xff]
  %v306 = vld [vmem:[%s4 + $0x2b8] sm:$0xff]
  %v307 = vld [vmem:[%s4 + $0x2c0] sm:$0xff]
  %v308 = vld [vmem:[%s4 + $0x2c8] sm:$0xff]
  %v309 = vld [vmem:[%s4 + $0x2d0] sm:$0xff]
  %v310 = vld [vmem:[%s4 + $0x2d8] sm:$0xff]
  %v311 = vld [vmem:[%s4 + $0x2e0] sm:$0xff]
  %v312 = vld [vmem:[%s4 + $0x2e8] sm:$0xff]
  %v313 = vld [vmem:[%s4 + $0x2f0] sm:$0xff]
  %v314 = vld [vmem:[%s4 + $0x2f8] sm:$0xff]
  %v315 = vld [vmem:[%s4 + $0x300] sm:$0xff]
  %v316 = vld [vmem:[%s4 + $0x308] sm:$0xff]
  %v317 = vld [vmem:[%s4 + $0x310] sm:$0xff]
  %v318 = vld [vmem:[%s4 + $0x318] sm:$0xff]
  %v319 = vld [vmem:[%s4 + $0x320] sm:$0xff]
  %v320 = vld [vmem:[%s4 + $0x328] sm:$0xff]
  %v321 = vld [vmem:[%s4 + $0x330] sm:$0xff]
  %v322 = vld [vmem:[%s4 + $0x338] sm:$0xff]
  %v323 = vld [vmem:[%s4 + $0x340] sm:$0xff]
  %v324 = vld [vmem:[%s4 + $0x348] sm:$0xff]
  %v325 = vld [vmem:[%s4 + $0x350] sm:$0xff]
  %v326 = vld [vmem:[%s4 + $0x358] sm:$0xff]
  %v327 = vld [vmem:[%s4 + $0x360] sm:$0xff]
  %v328 = vld [vmem:[%s4 + $0x368] sm:$0xff]
  %v329 = vld [vmem:[%s4 + $0x370] sm:$0xff]
  %v330 = vld [vmem:[%s4 + $0x378] sm:$0xff]
  %v331 = vld [vmem:[%s4 + $0x380] sm:$0xff]
  %v332 = vld [vmem:[%s4 + $0x388] sm:$0xff]
  %v333 = vld [vmem:[%s4 + $0x390] sm:$0xff]
  %v334 = vld [vmem:[%s4 + $0x398] sm:$0xff]
  %v335 = vld [vmem:[%s4 + $0x3a0] sm:$0xff]
  %v336 = vld [vmem:[%s4 + $0x3a8] sm:$0xff]
  %v337 = vld [vmem:[%s4 + $0x3b0] sm:$0xff]
  %v338 = vld [vmem:[%s4 + $0x3b8] sm:$0xff]
  %v339 = vld [vmem:[%s4 + $0x3c0] sm:$0xff]
  %v340 = vld [vmem:[%s4 + $0x3c8] sm:$0xff]
  %v341 = vld [vmem:[%s4 + $0x3d0] sm:$0xff]
  %v342 = vld [vmem:[%s4 + $0x3d8] sm:$0xff]
  %v343 = vld [vmem:[%s4 + $0x3e0] sm:$0xff]
  %v344 = vld [vmem:[%s4 + $0x3e8] sm:$0xff]
  %v345 = vld [vmem:[%s4 + $0x3f0] sm:$0xff]
  %v346 = vld [vmem:[%s4 + $0x3f8] sm:$0xff]
  %v347 = vld [vmem:[%s5] sm:$0x1]
  %v349 = vlaneseq
  %v350 = vshrl.u32 %v349, 7
  %v351 = vsub.s32 0, %v350
  %v352 = vrot.slane %v347, %v351
  %354 = vmatprep.subr.mxu0 0.0
  %355 = vmatpush1.msra.mxu0 %v234
  %356 = vmatprep.subr.mxu0 0.0
  %357 = vmatpush1.msra.mxu0 %v233
  %358 = vmatprep.subr.mxu0 0.0
  %359 = vmatpush1.msra.mxu0 %v232
  %360 = vmatprep.subr.mxu0 0.0
  %361 = vmatpush1.msra.mxu0 %v231
  %362 = vmatprep.subr.mxu0 0.0
  %363 = vmatpush1.msra.mxu0 %v230
  %364 = vmatprep.subr.mxu0 0.0
  %365 = vmatpush1.msra.mxu0 %v229
  %366 = vmatprep.subr.mxu0 0.0
  %367 = vmatpush1.msra.mxu0 %v228
  %368 = vmatprep.subr.mxu0 0.0
  %369 = vmatpush1.msra.mxu0 %v227
  %370 = vmatprep.subr.mxu0 0.0
  %371 = vmatpush1.msra.mxu0 %v226
  %372 = vmatprep.subr.mxu0 0.0
  %373 = vmatpush1.msra.mxu0 %v225
  %374 = vmatprep.subr.mxu0 0.0
  %375 = vmatpush1.msra.mxu0 %v224
  %376 = vmatprep.subr.mxu0 0.0
  %377 = vmatpush1.msra.mxu0 %v223
  %378 = vmatprep.subr.mxu0 0.0
  %379 = vmatpush1.msra.mxu0 %v222
  %380 = vmatprep.subr.mxu0 0.0
  %381 = vmatpush1.msra.mxu0 %v221
  %382 = vmatprep.subr.mxu0 0.0
  %383 = vmatpush1.msra.mxu0 %v220
  %384 = vmatprep.subr.mxu0 0.0
  %385 = vmatpush1.msra.mxu0 %v219
  %386 = vmatprep.subr.mxu0 0.0
  %387 = vmatpush2.msra.mxu0 %v250
  %388 = vmatprep.subr.mxu0 0.0
  %389 = vmatpush2.msra.mxu0 %v249
  %390 = vmatprep.subr.mxu0 0.0
  %391 = vmatpush2.msra.mxu0 %v248
  %392 = vmatprep.subr.mxu0 0.0
  %393 = vmatpush2.msra.mxu0 %v247
  %394 = vmatprep.subr.mxu0 0.0
  %395 = vmatpush2.msra.mxu0 %v246
  %396 = vmatprep.subr.mxu0 0.0
  %397 = vmatpush2.msra.mxu0 %v245
  %398 = vmatprep.subr.mxu0 0.0
  %399 = vmatpush2.msra.mxu0 %v244
  %400 = vmatprep.subr.mxu0 0.0
  %401 = vmatpush2.msra.mxu0 %v243
  %402 = vmatprep.subr.mxu0 0.0
  %403 = vmatpush2.msra.mxu0 %v242
  %404 = vmatprep.subr.mxu0 0.0
  %405 = vmatpush2.msra.mxu0 %v241
  %406 = vmatprep.subr.mxu0 0.0
  %407 = vmatpush2.msra.mxu0 %v240
  %408 = vmatprep.subr.mxu0 0.0
  %409 = vmatpush2.msra.mxu0 %v239
  %410 = vmatprep.subr.mxu0 0.0
  %411 = vmatpush2.msra.mxu0 %v238
  %412 = vmatprep.subr.mxu0 0.0
  %413 = vmatpush2.msra.mxu0 %v237
  %414 = vmatprep.subr.mxu0 0.0
  %415 = vmatpush2.msra.mxu0 %v236
  %416 = vmatprep.subr.mxu0 0.0
  %417 = vmatpush2.msra.mxu0 %v235
  %418 = vmatprep.mubr.f32.mxu0 %v196
  %419 = vmatmul.mubr.f32.gmra.mxu0 %v195
  %v420 = vpop.f32.mrf.mxu0
  %v421 = vadd.f32 %v352, %v420
  %v422 = vpop.f32.mrf.mxu0
  %423 = vmatprep.mubr.f32.mxu0 %v204
  %424 = vmatmul.mubr.f32.gmra.mxu0 %v203
  %v425 = vpop.f32.mrf.mxu0
  %v426 = vadd.f32 %v352, %v425
  %v427 = vpop.f32.mrf.mxu0
  %428 = vmatprep.mubr.f32.mxu0 %v212
  %429 = vmatmul.mubr.f32.gmra.mxu0 %v211
  %v430 = vpop.f32.mrf.mxu0
  %v431 = vadd.f32 %v352, %v430
  %v432 = vpop.f32.mrf.mxu0
  %433 = vdwg.mxu0
  %434 = vmatprep.subr.mxu0 0.0
  %435 = vmatpush1.msra.mxu0 %v266
  %436 = vmatprep.subr.mxu0 0.0
  %437 = vmatpush1.msra.mxu0 %v265
  %438 = vmatprep.subr.mxu0 0.0
  %439 = vmatpush1.msra.mxu0 %v264
  %440 = vmatprep.subr.mxu0 0.0
  %441 = vmatpush1.msra.mxu0 %v263
  %442 = vmatprep.subr.mxu0 0.0
  %443 = vmatpush1.msra.mxu0 %v262
  %444 = vmatprep.subr.mxu0 0.0
  %445 = vmatpush1.msra.mxu0 %v261
  %446 = vmatprep.subr.mxu0 0.0
  %447 = vmatpush1.msra.mxu0 %v260
  %448 = vmatprep.subr.mxu0 0.0
  %449 = vmatpush1.msra.mxu0 %v259
  %450 = vmatprep.subr.mxu0 0.0
  %451 = vmatpush1.msra.mxu0 %v258
  %452 = vmatprep.subr.mxu0 0.0
  %453 = vmatpush1.msra.mxu0 %v257
  %454 = vmatprep.subr.mxu0 0.0
  %455 = vmatpush1.msra.mxu0 %v256
  %456 = vmatprep.subr.mxu0 0.0
  %457 = vmatpush1.msra.mxu0 %v255
  %458 = vmatprep.subr.mxu0 0.0
  %459 = vmatpush1.msra.mxu0 %v254
  %460 = vmatprep.subr.mxu0 0.0
  %461 = vmatpush1.msra.mxu0 %v253
  %462 = vmatprep.subr.mxu0 0.0
  %463 = vmatpush1.msra.mxu0 %v252
  %464 = vmatprep.subr.mxu0 0.0
  %465 = vmatpush1.msra.mxu0 %v251
  %466 = vmatprep.subr.mxu0 0.0
  %467 = vmatpush2.msra.mxu0 %v282
  %468 = vmatprep.subr.mxu0 0.0
  %469 = vmatpush2.msra.mxu0 %v281
  %470 = vmatprep.subr.mxu0 0.0
  %471 = vmatpush2.msra.mxu0 %v280
  %472 = vmatprep.subr.mxu0 0.0
  %473 = vmatpush2.msra.mxu0 %v279
  %474 = vmatprep.subr.mxu0 0.0
  %475 = vmatpush2.msra.mxu0 %v278
  %476 = vmatprep.subr.mxu0 0.0
  %477 = vmatpush2.msra.mxu0 %v277
  %478 = vmatprep.subr.mxu0 0.0
  %479 = vmatpush2.msra.mxu0 %v276
  %480 = vmatprep.subr.mxu0 0.0
  %481 = vmatpush2.msra.mxu0 %v275
  %482 = vmatprep.subr.mxu0 0.0
  %483 = vmatpush2.msra.mxu0 %v274
  %484 = vmatprep.subr.mxu0 0.0
  %485 = vmatpush2.msra.mxu0 %v273
  %486 = vmatprep.subr.mxu0 0.0
  %487 = vmatpush2.msra.mxu0 %v272
  %488 = vmatprep.subr.mxu0 0.0
  %489 = vmatpush2.msra.mxu0 %v271
  %490 = vmatprep.subr.mxu0 0.0
  %491 = vmatpush2.msra.mxu0 %v270
  %492 = vmatprep.subr.mxu0 0.0
  %493 = vmatpush2.msra.mxu0 %v269
  %494 = vmatprep.subr.mxu0 0.0
  %495 = vmatpush2.msra.mxu0 %v268
  %496 = vmatprep.subr.mxu0 0.0
  %497 = vmatpush2.msra.mxu0 %v267
  %498 = vmatprep.mubr.f32.mxu0 %v198
  %499 = vmatmul.mubr.f32.gmra.mxu0 %v197
  %v500 = vpop.f32.mrf.mxu0
  %v501 = vadd.f32 %v421, %v500
  %v502 = vpop.f32.mrf.mxu0
  %503 = vmatprep.mubr.f32.mxu0 %v206
  %504 = vmatmul.mubr.f32.gmra.mxu0 %v205
  %v505 = vpop.f32.mrf.mxu0
  %v506 = vadd.f32 %v426, %v505
  %v507 = vpop.f32.mrf.mxu0
  %508 = vmatprep.mubr.f32.mxu0 %v214
  %509 = vmatmul.mubr.f32.gmra.mxu0 %v213
  %v510 = vpop.f32.mrf.mxu0
  %v511 = vadd.f32 %v431, %v510
  %v512 = vpop.f32.mrf.mxu0
  %513 = vdwg.mxu0
  %514 = vmatprep.subr.mxu0 0.0
  %515 = vmatpush1.msra.mxu0 %v298
  %516 = vmatprep.subr.mxu0 0.0
  %517 = vmatpush1.msra.mxu0 %v297
  %518 = vmatprep.subr.mxu0 0.0
  %519 = vmatpush1.msra.mxu0 %v296
  %520 = vmatprep.subr.mxu0 0.0
  %521 = vmatpush1.msra.mxu0 %v295
  %522 = vmatprep.subr.mxu0 0.0
  %523 = vmatpush1.msra.mxu0 %v294
  %524 = vmatprep.subr.mxu0 0.0
  %525 = vmatpush1.msra.mxu0 %v293
  %526 = vmatprep.subr.mxu0 0.0
  %527 = vmatpush1.msra.mxu0 %v292
  %528 = vmatprep.subr.mxu0 0.0
  %529 = vmatpush1.msra.mxu0 %v291
  %530 = vmatprep.subr.mxu0 0.0
  %531 = vmatpush1.msra.mxu0 %v290
  %532 = vmatprep.subr.mxu0 0.0
  %533 = vmatpush1.msra.mxu0 %v289
  %534 = vmatprep.subr.mxu0 0.0
  %535 = vmatpush1.msra.mxu0 %v288
  %536 = vmatprep.subr.mxu0 0.0
  %537 = vmatpush1.msra.mxu0 %v287
  %538 = vmatprep.subr.mxu0 0.0
  %539 = vmatpush1.msra.mxu0 %v286
  %540 = vmatprep.subr.mxu0 0.0
  %541 = vmatpush1.msra.mxu0 %v285
  %542 = vmatprep.subr.mxu0 0.0
  %543 = vmatpush1.msra.mxu0 %v284
  %544 = vmatprep.subr.mxu0 0.0
  %545 = vmatpush1.msra.mxu0 %v283
  %546 = vmatprep.subr.mxu0 0.0
  %547 = vmatpush2.msra.mxu0 %v314
  %548 = vmatprep.subr.mxu0 0.0
  %549 = vmatpush2.msra.mxu0 %v313
  %550 = vmatprep.subr.mxu0 0.0
  %551 = vmatpush2.msra.mxu0 %v312
  %552 = vmatprep.subr.mxu0 0.0
  %553 = vmatpush2.msra.mxu0 %v311
  %554 = vmatprep.subr.mxu0 0.0
  %555 = vmatpush2.msra.mxu0 %v310
  %556 = vmatprep.subr.mxu0 0.0
  %557 = vmatpush2.msra.mxu0 %v309
  %558 = vmatprep.subr.mxu0 0.0
  %559 = vmatpush2.msra.mxu0 %v308
  %560 = vmatprep.subr.mxu0 0.0
  %561 = vmatpush2.msra.mxu0 %v307
  %562 = vmatprep.subr.mxu0 0.0
  %563 = vmatpush2.msra.mxu0 %v306
  %564 = vmatprep.subr.mxu0 0.0
  %565 = vmatpush2.msra.mxu0 %v305
  %566 = vmatprep.subr.mxu0 0.0
  %567 = vmatpush2.msra.mxu0 %v304
  %568 = vmatprep.subr.mxu0 0.0
  %569 = vmatpush2.msra.mxu0 %v303
  %570 = vmatprep.subr.mxu0 0.0
  %571 = vmatpush2.msra.mxu0 %v302
  %572 = vmatprep.subr.mxu0 0.0
  %573 = vmatpush2.msra.mxu0 %v301
  %574 = vmatprep.subr.mxu0 0.0
  %575 = vmatpush2.msra.mxu0 %v300
  %576 = vmatprep.subr.mxu0 0.0
  %577 = vmatpush2.msra.mxu0 %v299
  %578 = vmatprep.mubr.f32.mxu0 %v200
  %579 = vmatmul.mubr.f32.gmra.mxu0 %v199
  %v580 = vpop.f32.mrf.mxu0
  %v581 = vadd.f32 %v501, %v580
  %v582 = vpop.f32.mrf.mxu0
  %583 = vmatprep.mubr.f32.mxu0 %v208
  %584 = vmatmul.mubr.f32.gmra.mxu0 %v207
  %v585 = vpop.f32.mrf.mxu0
  %v586 = vadd.f32 %v506, %v585
  %v587 = vpop.f32.mrf.mxu0
  %588 = vmatprep.mubr.f32.mxu0 %v216
  %589 = vmatmul.mubr.f32.gmra.mxu0 %v215
  %v590 = vpop.f32.mrf.mxu0
  %v591 = vadd.f32 %v511, %v590
  %v592 = vpop.f32.mrf.mxu0
  %593 = vdwg.mxu0
  %594 = vmatprep.subr.mxu0 0.0
  %595 = vmatpush1.msra.mxu0 %v330
  %596 = vmatprep.subr.mxu0 0.0
  %597 = vmatpush1.msra.mxu0 %v329
  %598 = vmatprep.subr.mxu0 0.0
  %599 = vmatpush1.msra.mxu0 %v328
  %600 = vmatprep.subr.mxu0 0.0
  %601 = vmatpush1.msra.mxu0 %v327
  %602 = vmatprep.subr.mxu0 0.0
  %603 = vmatpush1.msra.mxu0 %v326
  %604 = vmatprep.subr.mxu0 0.0
  %605 = vmatpush1.msra.mxu0 %v325
  %606 = vmatprep.subr.mxu0 0.0
  %607 = vmatpush1.msra.mxu0 %v324
  %608 = vmatprep.subr.mxu0 0.0
  %609 = vmatpush1.msra.mxu0 %v323
  %610 = vmatprep.subr.mxu0 0.0
  %611 = vmatpush1.msra.mxu0 %v322
  %612 = vmatprep.subr.mxu0 0.0
  %613 = vmatpush1.msra.mxu0 %v321
  %614 = vmatprep.subr.mxu0 0.0
  %615 = vmatpush1.msra.mxu0 %v320
  %616 = vmatprep.subr.mxu0 0.0
  %617 = vmatpush1.msra.mxu0 %v319
  %618 = vmatprep.subr.mxu0 0.0
  %619 = vmatpush1.msra.mxu0 %v318
  %620 = vmatprep.subr.mxu0 0.0
  %621 = vmatpush1.msra.mxu0 %v317
  %622 = vmatprep.subr.mxu0 0.0
  %623 = vmatpush1.msra.mxu0 %v316
  %624 = vmatprep.subr.mxu0 0.0
  %625 = vmatpush1.msra.mxu0 %v315
  %626 = vmatprep.subr.mxu0 0.0
  %627 = vmatpush2.msra.mxu0 %v346
  %628 = vmatprep.subr.mxu0 0.0
  %629 = vmatpush2.msra.mxu0 %v345
  %630 = vmatprep.subr.mxu0 0.0
  %631 = vmatpush2.msra.mxu0 %v344
  %632 = vmatprep.subr.mxu0 0.0
  %633 = vmatpush2.msra.mxu0 %v343
  %634 = vmatprep.subr.mxu0 0.0
  %635 = vmatpush2.msra.mxu0 %v342
  %636 = vmatprep.subr.mxu0 0.0
  %637 = vmatpush2.msra.mxu0 %v341
  %638 = vmatprep.subr.mxu0 0.0
  %639 = vmatpush2.msra.mxu0 %v340
  %640 = vmatprep.subr.mxu0 0.0
  %641 = vmatpush2.msra.mxu0 %v339
  %642 = vmatprep.subr.mxu0 0.0
  %643 = vmatpush2.msra.mxu0 %v338
  %644 = vmatprep.subr.mxu0 0.0
  %645 = vmatpush2.msra.mxu0 %v337
  %646 = vmatprep.subr.mxu0 0.0
  %647 = vmatpush2.msra.mxu0 %v336
  %648 = vmatprep.subr.mxu0 0.0
  %649 = vmatpush2.msra.mxu0 %v335
  %650 = vmatprep.subr.mxu0 0.0
  %651 = vmatpush2.msra.mxu0 %v334
  %652 = vmatprep.subr.mxu0 0.0
  %653 = vmatpush2.msra.mxu0 %v333
  %654 = vmatprep.subr.mxu0 0.0
  %655 = vmatpush2.msra.mxu0 %v332
  %656 = vmatprep.subr.mxu0 0.0
  %657 = vmatpush2.msra.mxu0 %v331
  %658 = vmatprep.mubr.f32.mxu0 %v202
  %659 = vmatmul.mubr.f32.gmra.mxu0 %v201
  %v660 = vpop.f32.mrf.mxu0
  %v661 = vadd.f32 %v581, %v660
  %v662 = vpop.f32.mrf.mxu0
  %663 = vmatprep.mubr.f32.mxu0 %v210
  %664 = vmatmul.mubr.f32.gmra.mxu0 %v209
  %v665 = vpop.f32.mrf.mxu0
  %v666 = vadd.f32 %v586, %v665
  %v667 = vpop.f32.mrf.mxu0
  %668 = vmatprep.mubr.f32.mxu0 %v218
  %669 = vmatmul.mubr.f32.gmra.mxu0 %v217
  %v670 = vpop.f32.mrf.mxu0
  %v671 = vadd.f32 %v591, %v670
  %v672 = vpop.f32.mrf.mxu0
  %673 = vdwg.mxu0
  %674 = vst [vmem:[#allocation2] sm:$0xff] %v152
  %675 = vst [vmem:[#allocation2 + $0x8] sm:$0xff] %v157
  %676 = vst [vmem:[#allocation2 + $0x10] sm:$0xff] %v162
  %677 = vst [vmem:[#allocation2 + $0x18] sm:$0xff] %v167
  %678 = vst [vmem:[#allocation2 + $0x20] sm:$0xff] %v172
  %679 = vst [vmem:[#allocation2 + $0x28] sm:$0xff] %v177
  %680 = vst [vmem:[#allocation2 + $0x30] sm:$0xff] %v182
  %681 = vst [vmem:[#allocation2 + $0x38] sm:$0xff] %v187
  %682 = vst [vmem:[#allocation2 + $0x40] sm:$0xff] %v192
  %683 = vst [vmem:[#allocation2 + $0x48] sm:$0xff] %v661
  %684 = vst [vmem:[#allocation2 + $0x50] sm:$0xff] %v666
  %685 = vst [vmem:[#allocation2 + $0x58] sm:$0xf] %v671
  %v686 = vld [vmem:[#allocation2] sm:$0xff]
  %v687 = vld [vmem:[#allocation2 + $0x8] sm:$0xff]
  %v688 = vld [vmem:[#allocation2 + $0x10] sm:$0xff]
  %v689 = vld [vmem:[#allocation2 + $0x18] sm:$0xff]
  %v690 = vld [vmem:[#allocation2 + $0x20] sm:$0xff]
  %v691 = vld [vmem:[#allocation2 + $0x28] sm:$0xff]
  %v692 = vld [vmem:[#allocation2 + $0x30] sm:$0xff]
  %v693 = vld [vmem:[#allocation2 + $0x38] sm:$0xff]
  %v694 = vld [vmem:[#allocation2 + $0x40] sm:$0xff]
  %v695 = vld [vmem:[#allocation2 + $0x48] sm:$0xff]
  %v696 = vld [vmem:[#allocation2 + $0x50] sm:$0xff]
  %v697 = vld [vmem:[#allocation2 + $0x58] sm:$0xff]
  %v698 = vld [vmem:[%s6] sm:$0xff]
  %v699 = vld [vmem:[%s6 + $0x8] sm:$0xff]
  %v700 = vld [vmem:[%s6 + $0x10] sm:$0xff]
  %v701 = vld [vmem:[%s6 + $0x18] sm:$0xff]
  %v702 = vld [vmem:[%s6 + $0x20] sm:$0xff]
  %v703 = vld [vmem:[%s6 + $0x28] sm:$0xff]
  %v704 = vld [vmem:[%s6 + $0x30] sm:$0xff]
  %v705 = vld [vmem:[%s6 + $0x38] sm:$0xff]
  %v706 = vld [vmem:[%s6 + $0x40] sm:$0xff]
  %v707 = vld [vmem:[%s6 + $0x48] sm:$0xff]
  %v708 = vld [vmem:[%s6 + $0x50] sm:$0xff]
  %v709 = vld [vmem:[%s6 + $0x58] sm:$0xff]
  %v710 = vld [vmem:[%s6 + $0x60] sm:$0xff]
  %v711 = vld [vmem:[%s6 + $0x68] sm:$0xff]
  %v712 = vld [vmem:[%s6 + $0x70] sm:$0xff]
  %v713 = vld [vmem:[%s6 + $0x78] sm:$0xff]
  %v714 = vld [vmem:[%s6 + $0x80] sm:$0xff]
  %v715 = vld [vmem:[%s6 + $0x88] sm:$0xff]
  %v716 = vld [vmem:[%s6 + $0x90] sm:$0xff]
  %v717 = vld [vmem:[%s6 + $0x98] sm:$0xff]
  %v718 = vld [vmem:[%s6 + $0xa0] sm:$0xff]
  %v719 = vld [vmem:[%s6 + $0xa8] sm:$0xff]
  %v720 = vld [vmem:[%s6 + $0xb0] sm:$0xff]
  %v721 = vld [vmem:[%s6 + $0xb8] sm:$0xff]
  %v722 = vld [vmem:[%s6 + $0xc0] sm:$0xff]
  %v723 = vld [vmem:[%s6 + $0xc8] sm:$0xff]
  %v724 = vld [vmem:[%s6 + $0xd0] sm:$0xff]
  %v725 = vld [vmem:[%s6 + $0xd8] sm:$0xff]
  %v726 = vld [vmem:[%s6 + $0xe0] sm:$0xff]
  %v727 = vld [vmem:[%s6 + $0xe8] sm:$0xff]
  %v728 = vld [vmem:[%s6 + $0xf0] sm:$0xff]
  %v729 = vld [vmem:[%s6 + $0xf8] sm:$0xff]
  %v730 = vld [vmem:[%s6 + $0x100] sm:$0xff]
  %v731 = vld [vmem:[%s6 + $0x108] sm:$0xff]
  %v732 = vld [vmem:[%s6 + $0x110] sm:$0xff]
  %v733 = vld [vmem:[%s6 + $0x118] sm:$0xff]
  %v734 = vld [vmem:[%s6 + $0x120] sm:$0xff]
  %v735 = vld [vmem:[%s6 + $0x128] sm:$0xff]
  %v736 = vld [vmem:[%s6 + $0x130] sm:$0xff]
  %v737 = vld [vmem:[%s6 + $0x138] sm:$0xff]
  %v738 = vld [vmem:[%s6 + $0x140] sm:$0xff]
  %v739 = vld [vmem:[%s6 + $0x148] sm:$0xff]
  %v740 = vld [vmem:[%s6 + $0x150] sm:$0xff]
  %v741 = vld [vmem:[%s6 + $0x158] sm:$0xff]
  %v742 = vld [vmem:[%s6 + $0x160] sm:$0xff]
  %v743 = vld [vmem:[%s6 + $0x168] sm:$0xff]
  %v744 = vld [vmem:[%s6 + $0x170] sm:$0xff]
  %v745 = vld [vmem:[%s6 + $0x178] sm:$0xff]
  %v746 = vld [vmem:[%s6 + $0x180] sm:$0xff]
  %v747 = vld [vmem:[%s6 + $0x188] sm:$0xff]
  %v748 = vld [vmem:[%s6 + $0x190] sm:$0xff]
  %v749 = vld [vmem:[%s6 + $0x198] sm:$0xff]
  %v750 = vld [vmem:[%s6 + $0x1a0] sm:$0xff]
  %v751 = vld [vmem:[%s6 + $0x1a8] sm:$0xff]
  %v752 = vld [vmem:[%s6 + $0x1b0] sm:$0xff]
  %v753 = vld [vmem:[%s6 + $0x1b8] sm:$0xff]
  %v754 = vld [vmem:[%s6 + $0x1c0] sm:$0xff]
  %v755 = vld [vmem:[%s6 + $0x1c8] sm:$0xff]
  %v756 = vld [vmem:[%s6 + $0x1d0] sm:$0xff]
  %v757 = vld [vmem:[%s6 + $0x1d8] sm:$0xff]
  %v758 = vld [vmem:[%s6 + $0x1e0] sm:$0xff]
  %v759 = vld [vmem:[%s6 + $0x1e8] sm:$0xff]
  %v760 = vld [vmem:[%s6 + $0x1f0] sm:$0xff]
  %v761 = vld [vmem:[%s6 + $0x1f8] sm:$0xff]
  %v762 = vld [vmem:[%s7] sm:$0xf]
  %v764 = vlaneseq
  %v765 = vshrl.u32 %v764, 7
  %v766 = vsub.s32 0, %v765
  %v767 = vrot.slane %v762, %v766
  %v768 = vlaneseq
  %v769 = vshrl.u32 %v768, 7
  %v770 = vsub.s32 1, %v769
  %v771 = vrot.slane %v762, %v770
  %v772 = vlaneseq
  %v773 = vshrl.u32 %v772, 7
  %v774 = vsub.s32 2, %v773
  %v775 = vrot.slane %v762, %v774
  %v776 = vlaneseq
  %v777 = vshrl.u32 %v776, 7
  %v778 = vsub.s32 3, %v777
  %v779 = vrot.slane %v762, %v778
  %784 = vmatprep.subr.mxu0 %v759
  %785 = vmatpush1.msra.mxu0 %v758
  %786 = vmatprep.subr.mxu0 %v755
  %787 = vmatpush1.msra.mxu0 %v754
  %788 = vmatprep.subr.mxu0 %v751
  %789 = vmatpush1.msra.mxu0 %v750
  %790 = vmatprep.subr.mxu0 %v747
  %791 = vmatpush1.msra.mxu0 %v746
  %792 = vmatprep.subr.mxu0 %v743
  %793 = vmatpush1.msra.mxu0 %v742
  %794 = vmatprep.subr.mxu0 %v739
  %795 = vmatpush1.msra.mxu0 %v738
  %796 = vmatprep.subr.mxu0 %v735
  %797 = vmatpush1.msra.mxu0 %v734
  %798 = vmatprep.subr.mxu0 %v731
  %799 = vmatpush1.msra.mxu0 %v730
  %800 = vmatprep.subr.mxu0 %v727
  %801 = vmatpush1.msra.mxu0 %v726
  %802 = vmatprep.subr.mxu0 %v723
  %803 = vmatpush1.msra.mxu0 %v722
  %804 = vmatprep.subr.mxu0 %v719
  %805 = vmatpush1.msra.mxu0 %v718
  %806 = vmatprep.subr.mxu0 %v715
  %807 = vmatpush1.msra.mxu0 %v714
  %808 = vmatprep.subr.mxu0 %v711
  %809 = vmatpush1.msra.mxu0 %v710
  %810 = vmatprep.subr.mxu0 %v707
  %811 = vmatpush1.msra.mxu0 %v706
  %812 = vmatprep.subr.mxu0 %v703
  %813 = vmatpush1.msra.mxu0 %v702
  %814 = vmatprep.subr.mxu0 %v699
  %815 = vmatpush1.msra.mxu0 %v698
  %816 = vmatprep.subr.mxu0 0.0
  %817 = vmatpush2.msra.mxu0 0.0
  %818 = vmatprep.subr.mxu0 0.0
  %819 = vmatpush2.msra.mxu0 0.0
  %820 = vmatprep.subr.mxu0 0.0
  %821 = vmatpush2.msra.mxu0 0.0
  %822 = vmatprep.subr.mxu0 0.0
  %823 = vmatpush2.msra.mxu0 0.0
  %824 = vmatprep.subr.mxu0 0.0
  %825 = vmatpush2.msra.mxu0 0.0
  %826 = vmatprep.subr.mxu0 0.0
  %827 = vmatpush2.msra.mxu0 0.0
  %828 = vmatprep.subr.mxu0 0.0
  %829 = vmatpush2.msra.mxu0 0.0
  %830 = vmatprep.subr.mxu0 0.0
  %831 = vmatpush2.msra.mxu0 0.0
  %832 = vmatprep.subr.mxu0 0.0
  %833 = vmatpush2.msra.mxu0 0.0
  %834 = vmatprep.subr.mxu0 0.0
  %835 = vmatpush2.msra.mxu0 0.0
  %836 = vmatprep.subr.mxu0 0.0
  %837 = vmatpush2.msra.mxu0 0.0
  %838 = vmatprep.subr.mxu0 0.0
  %839 = vmatpush2.msra.mxu0 0.0
  %840 = vmatprep.subr.mxu0 0.0
  %841 = vmatpush2.msra.mxu0 0.0
  %842 = vmatprep.subr.mxu0 0.0
  %843 = vmatpush2.msra.mxu0 0.0
  %844 = vmatprep.subr.mxu0 0.0
  %845 = vmatpush2.msra.mxu0 0.0
  %846 = vmatprep.subr.mxu0 0.0
  %847 = vmatpush2.msra.mxu0 0.0
  %848 = vmatprep.mubr.f32.mxu0 0.0
  %849 = vmatmul.mubr.f32.gmra.mxu0 %v686
  %v850 = vpop.f32.mrf.mxu0
  %v851 = vadd.f32 %v767, %v850
  %v852 = vpop.f32.mrf.mxu0
  %v853 = vadd.f32 %v771, %v852
  %854 = vmatprep.mubr.f32.mxu0 0.0
  %855 = vmatmul.mubr.f32.gmra.mxu0 %v687
  %v856 = vpop.f32.mrf.mxu0
  %v857 = vadd.f32 %v767, %v856
  %v858 = vpop.f32.mrf.mxu0
  %v859 = vadd.f32 %v771, %v858
  %860 = vmatprep.mubr.f32.mxu0 0.0
  %861 = vmatmul.mubr.f32.gmra.mxu0 %v688
  %v862 = vpop.f32.mrf.mxu0
  %v863 = vadd.f32 %v767, %v862
  %v864 = vpop.f32.mrf.mxu0
  %v865 = vadd.f32 %v771, %v864
  %866 = vmatprep.mubr.f32.mxu0 0.0
  %867 = vmatmul.mubr.f32.gmra.mxu0 %v689
  %v868 = vpop.f32.mrf.mxu0
  %v869 = vadd.f32 %v767, %v868
  %v870 = vpop.f32.mrf.mxu0
  %v871 = vadd.f32 %v771, %v870
  %872 = vmatprep.mubr.f32.mxu0 0.0
  %873 = vmatmul.mubr.f32.gmra.mxu0 %v690
  %v874 = vpop.f32.mrf.mxu0
  %v875 = vadd.f32 %v767, %v874
  %v876 = vpop.f32.mrf.mxu0
  %v877 = vadd.f32 %v771, %v876
  %878 = vmatprep.mubr.f32.mxu0 0.0
  %879 = vmatmul.mubr.f32.gmra.mxu0 %v691
  %v880 = vpop.f32.mrf.mxu0
  %v881 = vadd.f32 %v767, %v880
  %v882 = vpop.f32.mrf.mxu0
  %v883 = vadd.f32 %v771, %v882
  %884 = vmatprep.mubr.f32.mxu0 0.0
  %885 = vmatmul.mubr.f32.gmra.mxu0 %v692
  %v886 = vpop.f32.mrf.mxu0
  %v887 = vadd.f32 %v767, %v886
  %v888 = vpop.f32.mrf.mxu0
  %v889 = vadd.f32 %v771, %v888
  %890 = vmatprep.mubr.f32.mxu0 0.0
  %891 = vmatmul.mubr.f32.gmra.mxu0 %v693
  %v892 = vpop.f32.mrf.mxu0
  %v893 = vadd.f32 %v767, %v892
  %v894 = vpop.f32.mrf.mxu0
  %v895 = vadd.f32 %v771, %v894
  %896 = vmatprep.mubr.f32.mxu0 0.0
  %897 = vmatmul.mubr.f32.gmra.mxu0 %v694
  %v898 = vpop.f32.mrf.mxu0
  %v899 = vadd.f32 %v767, %v898
  %v900 = vpop.f32.mrf.mxu0
  %v901 = vadd.f32 %v771, %v900
  %902 = vmatprep.mubr.f32.mxu0 0.0
  %903 = vmatmul.mubr.f32.gmra.mxu0 %v695
  %v904 = vpop.f32.mrf.mxu0
  %v905 = vadd.f32 %v767, %v904
  %v906 = vpop.f32.mrf.mxu0
  %v907 = vadd.f32 %v771, %v906
  %908 = vmatprep.mubr.f32.mxu0 0.0
  %909 = vmatmul.mubr.f32.gmra.mxu0 %v696
  %v910 = vpop.f32.mrf.mxu0
  %v911 = vadd.f32 %v767, %v910
  %v912 = vpop.f32.mrf.mxu0
  %v913 = vadd.f32 %v771, %v912
  %914 = vmatprep.mubr.f32.mxu0 0.0
  %915 = vmatmul.mubr.f32.gmra.mxu0 %v697
  %v916 = vpop.f32.mrf.mxu0
  %v917 = vadd.f32 %v767, %v916
  %v918 = vpop.f32.mrf.mxu0
  %v919 = vadd.f32 %v771, %v918
  %920 = vdwg.mxu0
  %921 = vmatprep.subr.mxu0 %v761
  %922 = vmatpush1.msra.mxu0 %v760
  %923 = vmatprep.subr.mxu0 %v757
  %924 = vmatpush1.msra.mxu0 %v756
  %925 = vmatprep.subr.mxu0 %v753
  %926 = vmatpush1.msra.mxu0 %v752
  %927 = vmatprep.subr.mxu0 %v749
  %928 = vmatpush1.msra.mxu0 %v748
  %929 = vmatprep.subr.mxu0 %v745
  %930 = vmatpush1.msra.mxu0 %v744
  %931 = vmatprep.subr.mxu0 %v741
  %932 = vmatpush1.msra.mxu0 %v740
  %933 = vmatprep.subr.mxu0 %v737
  %934 = vmatpush1.msra.mxu0 %v736
  %935 = vmatprep.subr.mxu0 %v733
  %936 = vmatpush1.msra.mxu0 %v732
  %937 = vmatprep.subr.mxu0 %v729
  %938 = vmatpush1.msra.mxu0 %v728
  %939 = vmatprep.subr.mxu0 %v725
  %940 = vmatpush1.msra.mxu0 %v724
  %941 = vmatprep.subr.mxu0 %v721
  %942 = vmatpush1.msra.mxu0 %v720
  %943 = vmatprep.subr.mxu0 %v717
  %944 = vmatpush1.msra.mxu0 %v716
  %945 = vmatprep.subr.mxu0 %v713
  %946 = vmatpush1.msra.mxu0 %v712
  %947 = vmatprep.subr.mxu0 %v709
  %948 = vmatpush1.msra.mxu0 %v708
  %949 = vmatprep.subr.mxu0 %v705
  %950 = vmatpush1.msra.mxu0 %v704
  %951 = vmatprep.subr.mxu0 %v701
  %952 = vmatpush1.msra.mxu0 %v700
  %953 = vmatprep.subr.mxu0 0.0
  %954 = vmatpush2.msra.mxu0 0.0
  %955 = vmatprep.subr.mxu0 0.0
  %956 = vmatpush2.msra.mxu0 0.0
  %957 = vmatprep.subr.mxu0 0.0
  %958 = vmatpush2.msra.mxu0 0.0
  %959 = vmatprep.subr.mxu0 0.0
  %960 = vmatpush2.msra.mxu0 0.0
  %961 = vmatprep.subr.mxu0 0.0
  %962 = vmatpush2.msra.mxu0 0.0
  %963 = vmatprep.subr.mxu0 0.0
  %964 = vmatpush2.msra.mxu0 0.0
  %965 = vmatprep.subr.mxu0 0.0
  %966 = vmatpush2.msra.mxu0 0.0
  %967 = vmatprep.subr.mxu0 0.0
  %968 = vmatpush2.msra.mxu0 0.0
  %969 = vmatprep.subr.mxu0 0.0
  %970 = vmatpush2.msra.mxu0 0.0
  %971 = vmatprep.subr.mxu0 0.0
  %972 = vmatpush2.msra.mxu0 0.0
  %973 = vmatprep.subr.mxu0 0.0
  %974 = vmatpush2.msra.mxu0 0.0
  %975 = vmatprep.subr.mxu0 0.0
  %976 = vmatpush2.msra.mxu0 0.0
  %977 = vmatprep.subr.mxu0 0.0
  %978 = vmatpush2.msra.mxu0 0.0
  %979 = vmatprep.subr.mxu0 0.0
  %980 = vmatpush2.msra.mxu0 0.0
  %981 = vmatprep.subr.mxu0 0.0
  %982 = vmatpush2.msra.mxu0 0.0
  %983 = vmatprep.subr.mxu0 0.0
  %984 = vmatpush2.msra.mxu0 0.0
  %985 = vmatprep.mubr.f32.mxu0 0.0
  %986 = vmatmul.mubr.f32.gmra.mxu0 %v686
  %v987 = vpop.f32.mrf.mxu0
  %v988 = vadd.f32 %v775, %v987
  %v989 = vpop.f32.mrf.mxu0
  %v990 = vadd.f32 %v779, %v989
  %991 = vmatprep.mubr.f32.mxu0 0.0
  %992 = vmatmul.mubr.f32.gmra.mxu0 %v687
  %v993 = vpop.f32.mrf.mxu0
  %v994 = vadd.f32 %v775, %v993
  %v995 = vpop.f32.mrf.mxu0
  %v996 = vadd.f32 %v779, %v995
  %997 = vmatprep.mubr.f32.mxu0 0.0
  %998 = vmatmul.mubr.f32.gmra.mxu0 %v688
  %v999 = vpop.f32.mrf.mxu0
  %v1000 = vadd.f32 %v775, %v999
  %v1001 = vpop.f32.mrf.mxu0
  %v1002 = vadd.f32 %v779, %v1001
  %1003 = vmatprep.mubr.f32.mxu0 0.0
  %1004 = vmatmul.mubr.f32.gmra.mxu0 %v689
  %v1005 = vpop.f32.mrf.mxu0
  %v1006 = vadd.f32 %v775, %v1005
  %v1007 = vpop.f32.mrf.mxu0
  %v1008 = vadd.f32 %v779, %v1007
  %1009 = vmatprep.mubr.f32.mxu0 0.0
  %1010 = vmatmul.mubr.f32.gmra.mxu0 %v690
  %v1011 = vpop.f32.mrf.mxu0
  %v1012 = vadd.f32 %v775, %v1011
  %v1013 = vpop.f32.mrf.mxu0
  %v1014 = vadd.f32 %v779, %v1013
  %1015 = vmatprep.mubr.f32.mxu0 0.0
  %1016 = vmatmul.mubr.f32.gmra.mxu0 %v691
  %v1017 = vpop.f32.mrf.mxu0
  %v1018 = vadd.f32 %v775, %v1017
  %v1019 = vpop.f32.mrf.mxu0
  %v1020 = vadd.f32 %v779, %v1019
  %1021 = vmatprep.mubr.f32.mxu0 0.0
  %1022 = vmatmul.mubr.f32.gmra.mxu0 %v692
  %v1023 = vpop.f32.mrf.mxu0
  %v1024 = vadd.f32 %v775, %v1023
  %v1025 = vpop.f32.mrf.mxu0
  %v1026 = vadd.f32 %v779, %v1025
  %1027 = vmatprep.mubr.f32.mxu0 0.0
  %1028 = vmatmul.mubr.f32.gmra.mxu0 %v693
  %v1029 = vpop.f32.mrf.mxu0
  %v1030 = vadd.f32 %v775, %v1029
  %v1031 = vpop.f32.mrf.mxu0
  %v1032 = vadd.f32 %v779, %v1031
  %1033 = vmatprep.mubr.f32.mxu0 0.0
  %1034 = vmatmul.mubr.f32.gmra.mxu0 %v694
  %v1035 = vpop.f32.mrf.mxu0
  %v1036 = vadd.f32 %v775, %v1035
  %v1037 = vpop.f32.mrf.mxu0
  %v1038 = vadd.f32 %v779, %v1037
  %1039 = vmatprep.mubr.f32.mxu0 0.0
  %1040 = vmatmul.mubr.f32.gmra.mxu0 %v695
  %v1041 = vpop.f32.mrf.mxu0
  %v1042 = vadd.f32 %v775, %v1041
  %v1043 = vpop.f32.mrf.mxu0
  %v1044 = vadd.f32 %v779, %v1043
  %1045 = vmatprep.mubr.f32.mxu0 0.0
  %1046 = vmatmul.mubr.f32.gmra.mxu0 %v696
  %v1047 = vpop.f32.mrf.mxu0
  %v1048 = vadd.f32 %v775, %v1047
  %v1049 = vpop.f32.mrf.mxu0
  %v1050 = vadd.f32 %v779, %v1049
  %1051 = vmatprep.mubr.f32.mxu0 0.0
  %1052 = vmatmul.mubr.f32.gmra.mxu0 %v697
  %v1053 = vpop.f32.mrf.mxu0
  %v1054 = vadd.f32 %v775, %v1053
  %v1055 = vpop.f32.mrf.mxu0
  %v1056 = vadd.f32 %v779, %v1055
  %1057 = vdwg.mxu0
  %v1058 = vmax.f32 %v851, 0.0
  %v1059 = vmax.f32 %v853, 0.0
  %v1060 = vmax.f32 %v988, 0.0
  %v1061 = vmax.f32 %v990, 0.0
  %v1062 = vmax.f32 %v857, 0.0
  %v1063 = vmax.f32 %v859, 0.0
  %v1064 = vmax.f32 %v994, 0.0
  %v1065 = vmax.f32 %v996, 0.0
  %v1066 = vmax.f32 %v863, 0.0
  %v1067 = vmax.f32 %v865, 0.0
  %v1068 = vmax.f32 %v1000, 0.0
  %v1069 = vmax.f32 %v1002, 0.0
  %v1070 = vmax.f32 %v869, 0.0
  %v1071 = vmax.f32 %v871, 0.0
  %v1072 = vmax.f32 %v1006, 0.0
  %v1073 = vmax.f32 %v1008, 0.0
  %v1074 = vmax.f32 %v875, 0.0
  %v1075 = vmax.f32 %v877, 0.0
  %v1076 = vmax.f32 %v1012, 0.0
  %v1077 = vmax.f32 %v1014, 0.0
  %v1078 = vmax.f32 %v881, 0.0
  %v1079 = vmax.f32 %v883, 0.0
  %v1080 = vmax.f32 %v1018, 0.0
  %v1081 = vmax.f32 %v1020, 0.0
  %v1082 = vmax.f32 %v887, 0.0
  %v1083 = vmax.f32 %v889, 0.0
  %v1084 = vmax.f32 %v1024, 0.0
  %v1085 = vmax.f32 %v1026, 0.0
  %v1086 = vmax.f32 %v893, 0.0
  %v1087 = vmax.f32 %v895, 0.0
  %v1088 = vmax.f32 %v1030, 0.0
  %v1089 = vmax.f32 %v1032, 0.0
  %v1090 = vmax.f32 %v899, 0.0
  %v1091 = vmax.f32 %v901, 0.0
  %v1092 = vmax.f32 %v1036, 0.0
  %v1093 = vmax.f32 %v1038, 0.0
  %v1094 = vmax.f32 %v905, 0.0
  %v1095 = vmax.f32 %v907, 0.0
  %v1096 = vmax.f32 %v1042, 0.0
  %v1097 = vmax.f32 %v1044, 0.0
  %v1098 = vmax.f32 %v911, 0.0
  %v1099 = vmax.f32 %v913, 0.0
  %v1100 = vmax.f32 %v1048, 0.0
  %v1101 = vmax.f32 %v1050, 0.0
  %v1102 = vmax.f32 %v917, 0.0
  %v1103 = vmax.f32 %v919, 0.0
  %v1104 = vmax.f32 %v1054, 0.0
  %v1105 = vmax.f32 %v1056, 0.0
  %v1106 = vld [vmem:[%s8] sm:$0xff]
  %v1107 = vld [vmem:[%s8 + $0x8] sm:$0xff]
  %v1108 = vld [vmem:[%s8 + $0x10] sm:$0xff]
  %v1109 = vld [vmem:[%s8 + $0x18] sm:$0xff]
  %v1110 = vld [vmem:[%s8 + $0x20] sm:$0xff]
  %v1111 = vld [vmem:[%s8 + $0x28] sm:$0xff]
  %v1112 = vld [vmem:[%s8 + $0x30] sm:$0xff]
  %v1113 = vld [vmem:[%s8 + $0x38] sm:$0xff]
  %v1114 = vld [vmem:[%s8 + $0x40] sm:$0xff]
  %v1115 = vld [vmem:[%s8 + $0x48] sm:$0xff]
  %v1116 = vld [vmem:[%s8 + $0x50] sm:$0xff]
  %v1117 = vld [vmem:[%s8 + $0x58] sm:$0xff]
  %v1118 = vld [vmem:[%s8 + $0x60] sm:$0xff]
  %v1119 = vld [vmem:[%s8 + $0x68] sm:$0xff]
  %v1120 = vld [vmem:[%s8 + $0x70] sm:$0xff]
  %v1121 = vld [vmem:[%s8 + $0x78] sm:$0xff]
  %v1122 = vld [vmem:[%s8 + $0x80] sm:$0xff]
  %v1123 = vld [vmem:[%s8 + $0x88] sm:$0xff]
  %v1124 = vld [vmem:[%s8 + $0x90] sm:$0xff]
  %v1125 = vld [vmem:[%s8 + $0x98] sm:$0xff]
  %v1126 = vld [vmem:[%s8 + $0xa0] sm:$0xff]
  %v1127 = vld [vmem:[%s8 + $0xa8] sm:$0xff]
  %v1128 = vld [vmem:[%s8 + $0xb0] sm:$0xff]
  %v1129 = vld [vmem:[%s8 + $0xb8] sm:$0xff]
  %v1130 = vld [vmem:[%s8 + $0xc0] sm:$0xff]
  %v1131 = vld [vmem:[%s8 + $0xc8] sm:$0xff]
  %v1132 = vld [vmem:[%s8 + $0xd0] sm:$0xff]
  %v1133 = vld [vmem:[%s8 + $0xd8] sm:$0xff]
  %v1134 = vld [vmem:[%s8 + $0xe0] sm:$0xff]
  %v1135 = vld [vmem:[%s8 + $0xe8] sm:$0xff]
  %v1136 = vld [vmem:[%s8 + $0xf0] sm:$0xff]
  %v1137 = vld [vmem:[%s8 + $0xf8] sm:$0xff]
  %v1138 = vld [vmem:[%s8 + $0x100] sm:$0xff]
  %v1139 = vld [vmem:[%s8 + $0x108] sm:$0xff]
  %v1140 = vld [vmem:[%s8 + $0x110] sm:$0xff]
  %v1141 = vld [vmem:[%s8 + $0x118] sm:$0xff]
  %v1142 = vld [vmem:[%s8 + $0x120] sm:$0xff]
  %v1143 = vld [vmem:[%s8 + $0x128] sm:$0xff]
  %v1144 = vld [vmem:[%s8 + $0x130] sm:$0xff]
  %v1145 = vld [vmem:[%s8 + $0x138] sm:$0xff]
  %v1146 = vld [vmem:[%s8 + $0x140] sm:$0xff]
  %v1147 = vld [vmem:[%s8 + $0x148] sm:$0xff]
  %v1148 = vld [vmem:[%s8 + $0x150] sm:$0xff]
  %v1149 = vld [vmem:[%s8 + $0x158] sm:$0xff]
  %v1150 = vld [vmem:[%s8 + $0x160] sm:$0xff]
  %v1151 = vld [vmem:[%s8 + $0x168] sm:$0xff]
  %v1152 = vld [vmem:[%s8 + $0x170] sm:$0xff]
  %v1153 = vld [vmem:[%s8 + $0x178] sm:$0xff]
  %v1154 = vld [vmem:[%s8 + $0x180] sm:$0xff]
  %v1155 = vld [vmem:[%s8 + $0x188] sm:$0xff]
  %v1156 = vld [vmem:[%s8 + $0x190] sm:$0xff]
  %v1157 = vld [vmem:[%s8 + $0x198] sm:$0xff]
  %v1158 = vld [vmem:[%s8 + $0x1a0] sm:$0xff]
  %v1159 = vld [vmem:[%s8 + $0x1a8] sm:$0xff]
  %v1160 = vld [vmem:[%s8 + $0x1b0] sm:$0xff]
  %v1161 = vld [vmem:[%s8 + $0x1b8] sm:$0xff]
  %v1162 = vld [vmem:[%s8 + $0x1c0] sm:$0xff]
  %v1163 = vld [vmem:[%s8 + $0x1c8] sm:$0xff]
  %v1164 = vld [vmem:[%s8 + $0x1d0] sm:$0xff]
  %v1165 = vld [vmem:[%s8 + $0x1d8] sm:$0xff]
  %v1166 = vld [vmem:[%s8 + $0x1e0] sm:$0xff]
  %v1167 = vld [vmem:[%s8 + $0x1e8] sm:$0xff]
  %v1168 = vld [vmem:[%s8 + $0x1f0] sm:$0xff]
  %v1169 = vld [vmem:[%s8 + $0x1f8] sm:$0xff]
  %v1170 = vld [vmem:[%s8 + $0x200] sm:$0xff]
  %v1171 = vld [vmem:[%s8 + $0x208] sm:$0xff]
  %v1172 = vld [vmem:[%s8 + $0x210] sm:$0xff]
  %v1173 = vld [vmem:[%s8 + $0x218] sm:$0xff]
  %v1174 = vld [vmem:[%s8 + $0x220] sm:$0xff]
  %v1175 = vld [vmem:[%s8 + $0x228] sm:$0xff]
  %v1176 = vld [vmem:[%s8 + $0x230] sm:$0xff]
  %v1177 = vld [vmem:[%s8 + $0x238] sm:$0xff]
  %v1178 = vld [vmem:[%s8 + $0x240] sm:$0xff]
  %v1179 = vld [vmem:[%s8 + $0x248] sm:$0xff]
  %v1180 = vld [vmem:[%s8 + $0x250] sm:$0xff]
  %v1181 = vld [vmem:[%s8 + $0x258] sm:$0xff]
  %v1182 = vld [vmem:[%s8 + $0x260] sm:$0xff]
  %v1183 = vld [vmem:[%s8 + $0x268] sm:$0xff]
  %v1184 = vld [vmem:[%s8 + $0x270] sm:$0xff]
  %v1185 = vld [vmem:[%s8 + $0x278] sm:$0xff]
  %v1186 = vld [vmem:[%s8 + $0x280] sm:$0xff]
  %v1187 = vld [vmem:[%s8 + $0x288] sm:$0xff]
  %v1188 = vld [vmem:[%s8 + $0x290] sm:$0xff]
  %v1189 = vld [vmem:[%s8 + $0x298] sm:$0xff]
  %v1190 = vld [vmem:[%s8 + $0x2a0] sm:$0xff]
  %v1191 = vld [vmem:[%s8 + $0x2a8] sm:$0xff]
  %v1192 = vld [vmem:[%s8 + $0x2b0] sm:$0xff]
  %v1193 = vld [vmem:[%s8 + $0x2b8] sm:$0xff]
  %v1194 = vld [vmem:[%s8 + $0x2c0] sm:$0xff]
  %v1195 = vld [vmem:[%s8 + $0x2c8] sm:$0xff]
  %v1196 = vld [vmem:[%s8 + $0x2d0] sm:$0xff]
  %v1197 = vld [vmem:[%s8 + $0x2d8] sm:$0xff]
  %v1198 = vld [vmem:[%s8 + $0x2e0] sm:$0xff]
  %v1199 = vld [vmem:[%s8 + $0x2e8] sm:$0xff]
  %v1200 = vld [vmem:[%s8 + $0x2f0] sm:$0xff]
  %v1201 = vld [vmem:[%s8 + $0x2f8] sm:$0xff]
  %v1202 = vld [vmem:[%s8 + $0x300] sm:$0xff]
  %v1203 = vld [vmem:[%s8 + $0x308] sm:$0xff]
  %v1204 = vld [vmem:[%s8 + $0x310] sm:$0xff]
  %v1205 = vld [vmem:[%s8 + $0x318] sm:$0xff]
  %v1206 = vld [vmem:[%s8 + $0x320] sm:$0xff]
  %v1207 = vld [vmem:[%s8 + $0x328] sm:$0xff]
  %v1208 = vld [vmem:[%s8 + $0x330] sm:$0xff]
  %v1209 = vld [vmem:[%s8 + $0x338] sm:$0xff]
  %v1210 = vld [vmem:[%s8 + $0x340] sm:$0xff]
  %v1211 = vld [vmem:[%s8 + $0x348] sm:$0xff]
  %v1212 = vld [vmem:[%s8 + $0x350] sm:$0xff]
  %v1213 = vld [vmem:[%s8 + $0x358] sm:$0xff]
  %v1214 = vld [vmem:[%s8 + $0x360] sm:$0xff]
  %v1215 = vld [vmem:[%s8 + $0x368] sm:$0xff]
  %v1216 = vld [vmem:[%s8 + $0x370] sm:$0xff]
  %v1217 = vld [vmem:[%s8 + $0x378] sm:$0xff]
  %v1218 = vld [vmem:[%s8 + $0x380] sm:$0xff]
  %v1219 = vld [vmem:[%s8 + $0x388] sm:$0xff]
  %v1220 = vld [vmem:[%s8 + $0x390] sm:$0xff]
  %v1221 = vld [vmem:[%s8 + $0x398] sm:$0xff]
  %v1222 = vld [vmem:[%s8 + $0x3a0] sm:$0xff]
  %v1223 = vld [vmem:[%s8 + $0x3a8] sm:$0xff]
  %v1224 = vld [vmem:[%s8 + $0x3b0] sm:$0xff]
  %v1225 = vld [vmem:[%s8 + $0x3b8] sm:$0xff]
  %v1226 = vld [vmem:[%s8 + $0x3c0] sm:$0xff]
  %v1227 = vld [vmem:[%s8 + $0x3c8] sm:$0xff]
  %v1228 = vld [vmem:[%s8 + $0x3d0] sm:$0xff]
  %v1229 = vld [vmem:[%s8 + $0x3d8] sm:$0xff]
  %v1230 = vld [vmem:[%s8 + $0x3e0] sm:$0xff]
  %v1231 = vld [vmem:[%s8 + $0x3e8] sm:$0xff]
  %v1232 = vld [vmem:[%s8 + $0x3f0] sm:$0xff]
  %v1233 = vld [vmem:[%s8 + $0x3f8] sm:$0xff]
  %v1234 = vld [vmem:[%s8 + $0x400] sm:$0xff]
  %v1235 = vld [vmem:[%s8 + $0x408] sm:$0xff]
  %v1236 = vld [vmem:[%s8 + $0x410] sm:$0xff]
  %v1237 = vld [vmem:[%s8 + $0x418] sm:$0xff]
  %v1238 = vld [vmem:[%s8 + $0x420] sm:$0xff]
  %v1239 = vld [vmem:[%s8 + $0x428] sm:$0xff]
  %v1240 = vld [vmem:[%s8 + $0x430] sm:$0xff]
  %v1241 = vld [vmem:[%s8 + $0x438] sm:$0xff]
  %v1242 = vld [vmem:[%s8 + $0x440] sm:$0xff]
  %v1243 = vld [vmem:[%s8 + $0x448] sm:$0xff]
  %v1244 = vld [vmem:[%s8 + $0x450] sm:$0xff]
  %v1245 = vld [vmem:[%s8 + $0x458] sm:$0xff]
  %v1246 = vld [vmem:[%s8 + $0x460] sm:$0xff]
  %v1247 = vld [vmem:[%s8 + $0x468] sm:$0xff]
  %v1248 = vld [vmem:[%s8 + $0x470] sm:$0xff]
  %v1249 = vld [vmem:[%s8 + $0x478] sm:$0xff]
  %v1250 = vld [vmem:[%s8 + $0x480] sm:$0xff]
  %v1251 = vld [vmem:[%s8 + $0x488] sm:$0xff]
  %v1252 = vld [vmem:[%s8 + $0x490] sm:$0xff]
  %v1253 = vld [vmem:[%s8 + $0x498] sm:$0xff]
  %v1254 = vld [vmem:[%s8 + $0x4a0] sm:$0xff]
  %v1255 = vld [vmem:[%s8 + $0x4a8] sm:$0xff]
  %v1256 = vld [vmem:[%s8 + $0x4b0] sm:$0xff]
  %v1257 = vld [vmem:[%s8 + $0x4b8] sm:$0xff]
  %v1258 = vld [vmem:[%s8 + $0x4c0] sm:$0xff]
  %v1259 = vld [vmem:[%s8 + $0x4c8] sm:$0xff]
  %v1260 = vld [vmem:[%s8 + $0x4d0] sm:$0xff]
  %v1261 = vld [vmem:[%s8 + $0x4d8] sm:$0xff]
  %v1262 = vld [vmem:[%s8 + $0x4e0] sm:$0xff]
  %v1263 = vld [vmem:[%s8 + $0x4e8] sm:$0xff]
  %v1264 = vld [vmem:[%s8 + $0x4f0] sm:$0xff]
  %v1265 = vld [vmem:[%s8 + $0x4f8] sm:$0xff]
  %v1266 = vld [vmem:[%s8 + $0x500] sm:$0xff]
  %v1267 = vld [vmem:[%s8 + $0x508] sm:$0xff]
  %v1268 = vld [vmem:[%s8 + $0x510] sm:$0xff]
  %v1269 = vld [vmem:[%s8 + $0x518] sm:$0xff]
  %v1270 = vld [vmem:[%s8 + $0x520] sm:$0xff]
  %v1271 = vld [vmem:[%s8 + $0x528] sm:$0xff]
  %v1272 = vld [vmem:[%s8 + $0x530] sm:$0xff]
  %v1273 = vld [vmem:[%s8 + $0x538] sm:$0xff]
  %v1274 = vld [vmem:[%s8 + $0x540] sm:$0xff]
  %v1275 = vld [vmem:[%s8 + $0x548] sm:$0xff]
  %v1276 = vld [vmem:[%s8 + $0x550] sm:$0xff]
  %v1277 = vld [vmem:[%s8 + $0x558] sm:$0xff]
  %v1278 = vld [vmem:[%s8 + $0x560] sm:$0xff]
  %v1279 = vld [vmem:[%s8 + $0x568] sm:$0xff]
  %v1280 = vld [vmem:[%s8 + $0x570] sm:$0xff]
  %v1281 = vld [vmem:[%s8 + $0x578] sm:$0xff]
  %v1282 = vld [vmem:[%s8 + $0x580] sm:$0xff]
  %v1283 = vld [vmem:[%s8 + $0x588] sm:$0xff]
  %v1284 = vld [vmem:[%s8 + $0x590] sm:$0xff]
  %v1285 = vld [vmem:[%s8 + $0x598] sm:$0xff]
  %v1286 = vld [vmem:[%s8 + $0x5a0] sm:$0xff]
  %v1287 = vld [vmem:[%s8 + $0x5a8] sm:$0xff]
  %v1288 = vld [vmem:[%s8 + $0x5b0] sm:$0xff]
  %v1289 = vld [vmem:[%s8 + $0x5b8] sm:$0xff]
  %v1290 = vld [vmem:[%s8 + $0x5c0] sm:$0xff]
  %v1291 = vld [vmem:[%s8 + $0x5c8] sm:$0xff]
  %v1292 = vld [vmem:[%s8 + $0x5d0] sm:$0xff]
  %v1293 = vld [vmem:[%s8 + $0x5d8] sm:$0xff]
  %v1294 = vld [vmem:[%s8 + $0x5e0] sm:$0xff]
  %v1295 = vld [vmem:[%s8 + $0x5e8] sm:$0xff]
  %v1296 = vld [vmem:[%s8 + $0x5f0] sm:$0xff]
  %v1297 = vld [vmem:[%s8 + $0x5f8] sm:$0xff]
  %v1298 = vld [vmem:[%s8 + $0x600] sm:$0xff]
  %v1299 = vld [vmem:[%s8 + $0x608] sm:$0xff]
  %v1300 = vld [vmem:[%s8 + $0x610] sm:$0xff]
  %v1301 = vld [vmem:[%s8 + $0x618] sm:$0xff]
  %v1302 = vld [vmem:[%s8 + $0x620] sm:$0xff]
  %v1303 = vld [vmem:[%s8 + $0x628] sm:$0xff]
  %v1304 = vld [vmem:[%s8 + $0x630] sm:$0xff]
  %v1305 = vld [vmem:[%s8 + $0x638] sm:$0xff]
  %v1306 = vld [vmem:[%s8 + $0x640] sm:$0xff]
  %v1307 = vld [vmem:[%s8 + $0x648] sm:$0xff]
  %v1308 = vld [vmem:[%s8 + $0x650] sm:$0xff]
  %v1309 = vld [vmem:[%s8 + $0x658] sm:$0xff]
  %v1310 = vld [vmem:[%s8 + $0x660] sm:$0xff]
  %v1311 = vld [vmem:[%s8 + $0x668] sm:$0xff]
  %v1312 = vld [vmem:[%s8 + $0x670] sm:$0xff]
  %v1313 = vld [vmem:[%s8 + $0x678] sm:$0xff]
  %v1314 = vld [vmem:[%s8 + $0x680] sm:$0xff]
  %v1315 = vld [vmem:[%s8 + $0x688] sm:$0xff]
  %v1316 = vld [vmem:[%s8 + $0x690] sm:$0xff]
  %v1317 = vld [vmem:[%s8 + $0x698] sm:$0xff]
  %v1318 = vld [vmem:[%s8 + $0x6a0] sm:$0xff]
  %v1319 = vld [vmem:[%s8 + $0x6a8] sm:$0xff]
  %v1320 = vld [vmem:[%s8 + $0x6b0] sm:$0xff]
  %v1321 = vld [vmem:[%s8 + $0x6b8] sm:$0xff]
  %v1322 = vld [vmem:[%s8 + $0x6c0] sm:$0xff]
  %v1323 = vld [vmem:[%s8 + $0x6c8] sm:$0xff]
  %v1324 = vld [vmem:[%s8 + $0x6d0] sm:$0xff]
  %v1325 = vld [vmem:[%s8 + $0x6d8] sm:$0xff]
  %v1326 = vld [vmem:[%s8 + $0x6e0] sm:$0xff]
  %v1327 = vld [vmem:[%s8 + $0x6e8] sm:$0xff]
  %v1328 = vld [vmem:[%s8 + $0x6f0] sm:$0xff]
  %v1329 = vld [vmem:[%s8 + $0x6f8] sm:$0xff]
  %v1330 = vld [vmem:[%s8 + $0x700] sm:$0xff]
  %v1331 = vld [vmem:[%s8 + $0x708] sm:$0xff]
  %v1332 = vld [vmem:[%s8 + $0x710] sm:$0xff]
  %v1333 = vld [vmem:[%s8 + $0x718] sm:$0xff]
  %v1334 = vld [vmem:[%s8 + $0x720] sm:$0xff]
  %v1335 = vld [vmem:[%s8 + $0x728] sm:$0xff]
  %v1336 = vld [vmem:[%s8 + $0x730] sm:$0xff]
  %v1337 = vld [vmem:[%s8 + $0x738] sm:$0xff]
  %v1338 = vld [vmem:[%s8 + $0x740] sm:$0xff]
  %v1339 = vld [vmem:[%s8 + $0x748] sm:$0xff]
  %v1340 = vld [vmem:[%s8 + $0x750] sm:$0xff]
  %v1341 = vld [vmem:[%s8 + $0x758] sm:$0xff]
  %v1342 = vld [vmem:[%s8 + $0x760] sm:$0xff]
  %v1343 = vld [vmem:[%s8 + $0x768] sm:$0xff]
  %v1344 = vld [vmem:[%s8 + $0x770] sm:$0xff]
  %v1345 = vld [vmem:[%s8 + $0x778] sm:$0xff]
  %v1346 = vld [vmem:[%s8 + $0x780] sm:$0xff]
  %v1347 = vld [vmem:[%s8 + $0x788] sm:$0xff]
  %v1348 = vld [vmem:[%s8 + $0x790] sm:$0xff]
  %v1349 = vld [vmem:[%s8 + $0x798] sm:$0xff]
  %v1350 = vld [vmem:[%s8 + $0x7a0] sm:$0xff]
  %v1351 = vld [vmem:[%s8 + $0x7a8] sm:$0xff]
  %v1352 = vld [vmem:[%s8 + $0x7b0] sm:$0xff]
  %v1353 = vld [vmem:[%s8 + $0x7b8] sm:$0xff]
  %v1354 = vld [vmem:[%s8 + $0x7c0] sm:$0xff]
  %v1355 = vld [vmem:[%s8 + $0x7c8] sm:$0xff]
  %v1356 = vld [vmem:[%s8 + $0x7d0] sm:$0xff]
  %v1357 = vld [vmem:[%s8 + $0x7d8] sm:$0xff]
  %v1358 = vld [vmem:[%s8 + $0x7e0] sm:$0xff]
  %v1359 = vld [vmem:[%s8 + $0x7e8] sm:$0xff]
  %v1360 = vld [vmem:[%s8 + $0x7f0] sm:$0xff]
  %v1361 = vld [vmem:[%s8 + $0x7f8] sm:$0xff]
  %v1362 = vld [vmem:[%s9] sm:$0xf]
  %v1364 = vlaneseq
  %v1365 = vshrl.u32 %v1364, 7
  %v1366 = vsub.s32 0, %v1365
  %v1367 = vrot.slane %v1362, %v1366
  %v1368 = vlaneseq
  %v1369 = vshrl.u32 %v1368, 7
  %v1370 = vsub.s32 1, %v1369
  %v1371 = vrot.slane %v1362, %v1370
  %v1372 = vlaneseq
  %v1373 = vshrl.u32 %v1372, 7
  %v1374 = vsub.s32 2, %v1373
  %v1375 = vrot.slane %v1362, %v1374
  %v1376 = vlaneseq
  %v1377 = vshrl.u32 %v1376, 7
  %v1378 = vsub.s32 3, %v1377
  %v1379 = vrot.slane %v1362, %v1378
  %1384 = vmatprep.subr.mxu0 %v1167
  %1385 = vmatpush1.msra.mxu0 %v1166
  %1386 = vmatprep.subr.mxu0 %v1163
  %1387 = vmatpush1.msra.mxu0 %v1162
  %1388 = vmatprep.subr.mxu0 %v1159
  %1389 = vmatpush1.msra.mxu0 %v1158
  %1390 = vmatprep.subr.mxu0 %v1155
  %1391 = vmatpush1.msra.mxu0 %v1154
  %1392 = vmatprep.subr.mxu0 %v1151
  %1393 = vmatpush1.msra.mxu0 %v1150
  %1394 = vmatprep.subr.mxu0 %v1147
  %1395 = vmatpush1.msra.mxu0 %v1146
  %1396 = vmatprep.subr.mxu0 %v1143
  %1397 = vmatpush1.msra.mxu0 %v1142
  %1398 = vmatprep.subr.mxu0 %v1139
  %1399 = vmatpush1.msra.mxu0 %v1138
  %1400 = vmatprep.subr.mxu0 %v1135
  %1401 = vmatpush1.msra.mxu0 %v1134
  %1402 = vmatprep.subr.mxu0 %v1131
  %1403 = vmatpush1.msra.mxu0 %v1130
  %1404 = vmatprep.subr.mxu0 %v1127
  %1405 = vmatpush1.msra.mxu0 %v1126
  %1406 = vmatprep.subr.mxu0 %v1123
  %1407 = vmatpush1.msra.mxu0 %v1122
  %1408 = vmatprep.subr.mxu0 %v1119
  %1409 = vmatpush1.msra.mxu0 %v1118
  %1410 = vmatprep.subr.mxu0 %v1115
  %1411 = vmatpush1.msra.mxu0 %v1114
  %1412 = vmatprep.subr.mxu0 %v1111
  %1413 = vmatpush1.msra.mxu0 %v1110
  %1414 = vmatprep.subr.mxu0 %v1107
  %1415 = vmatpush1.msra.mxu0 %v1106
  %1416 = vmatprep.subr.mxu0 %v1231
  %1417 = vmatpush2.msra.mxu0 %v1230
  %1418 = vmatprep.subr.mxu0 %v1227
  %1419 = vmatpush2.msra.mxu0 %v1226
  %1420 = vmatprep.subr.mxu0 %v1223
  %1421 = vmatpush2.msra.mxu0 %v1222
  %1422 = vmatprep.subr.mxu0 %v1219
  %1423 = vmatpush2.msra.mxu0 %v1218
  %1424 = vmatprep.subr.mxu0 %v1215
  %1425 = vmatpush2.msra.mxu0 %v1214
  %1426 = vmatprep.subr.mxu0 %v1211
  %1427 = vmatpush2.msra.mxu0 %v1210
  %1428 = vmatprep.subr.mxu0 %v1207
  %1429 = vmatpush2.msra.mxu0 %v1206
  %1430 = vmatprep.subr.mxu0 %v1203
  %1431 = vmatpush2.msra.mxu0 %v1202
  %1432 = vmatprep.subr.mxu0 %v1199
  %1433 = vmatpush2.msra.mxu0 %v1198
  %1434 = vmatprep.subr.mxu0 %v1195
  %1435 = vmatpush2.msra.mxu0 %v1194
  %1436 = vmatprep.subr.mxu0 %v1191
  %1437 = vmatpush2.msra.mxu0 %v1190
  %1438 = vmatprep.subr.mxu0 %v1187
  %1439 = vmatpush2.msra.mxu0 %v1186
  %1440 = vmatprep.subr.mxu0 %v1183
  %1441 = vmatpush2.msra.mxu0 %v1182
  %1442 = vmatprep.subr.mxu0 %v1179
  %1443 = vmatpush2.msra.mxu0 %v1178
  %1444 = vmatprep.subr.mxu0 %v1175
  %1445 = vmatpush2.msra.mxu0 %v1174
  %1446 = vmatprep.subr.mxu0 %v1171
  %1447 = vmatpush2.msra.mxu0 %v1170
  %1448 = vmatprep.mubr.f32.mxu0 %v1059
  %1449 = vmatmul.mubr.f32.gmra.mxu0 %v1058
  %v1450 = vpop.f32.mrf.mxu0
  %v1451 = vadd.f32 %v1367, %v1450
  %v1452 = vpop.f32.mrf.mxu0
  %v1453 = vadd.f32 %v1371, %v1452
  %1454 = vmatprep.mubr.f32.mxu0 %v1063
  %1455 = vmatmul.mubr.f32.gmra.mxu0 %v1062
  %v1456 = vpop.f32.mrf.mxu0
  %v1457 = vadd.f32 %v1367, %v1456
  %v1458 = vpop.f32.mrf.mxu0
  %v1459 = vadd.f32 %v1371, %v1458
  %1460 = vmatprep.mubr.f32.mxu0 %v1067
  %1461 = vmatmul.mubr.f32.gmra.mxu0 %v1066
  %v1462 = vpop.f32.mrf.mxu0
  %v1463 = vadd.f32 %v1367, %v1462
  %v1464 = vpop.f32.mrf.mxu0
  %v1465 = vadd.f32 %v1371, %v1464
  %1466 = vmatprep.mubr.f32.mxu0 %v1071
  %1467 = vmatmul.mubr.f32.gmra.mxu0 %v1070
  %v1468 = vpop.f32.mrf.mxu0
  %v1469 = vadd.f32 %v1367, %v1468
  %v1470 = vpop.f32.mrf.mxu0
  %v1471 = vadd.f32 %v1371, %v1470
  %1472 = vmatprep.mubr.f32.mxu0 %v1075
  %1473 = vmatmul.mubr.f32.gmra.mxu0 %v1074
  %v1474 = vpop.f32.mrf.mxu0
  %v1475 = vadd.f32 %v1367, %v1474
  %v1476 = vpop.f32.mrf.mxu0
  %v1477 = vadd.f32 %v1371, %v1476
  %1478 = vmatprep.mubr.f32.mxu0 %v1079
  %1479 = vmatmul.mubr.f32.gmra.mxu0 %v1078
  %v1480 = vpop.f32.mrf.mxu0
  %v1481 = vadd.f32 %v1367, %v1480
  %v1482 = vpop.f32.mrf.mxu0
  %v1483 = vadd.f32 %v1371, %v1482
  %1484 = vmatprep.mubr.f32.mxu0 %v1083
  %1485 = vmatmul.mubr.f32.gmra.mxu0 %v1082
  %v1486 = vpop.f32.mrf.mxu0
  %v1487 = vadd.f32 %v1367, %v1486
  %v1488 = vpop.f32.mrf.mxu0
  %v1489 = vadd.f32 %v1371, %v1488
  %1490 = vmatprep.mubr.f32.mxu0 %v1087
  %1491 = vmatmul.mubr.f32.gmra.mxu0 %v1086
  %v1492 = vpop.f32.mrf.mxu0
  %v1493 = vadd.f32 %v1367, %v1492
  %v1494 = vpop.f32.mrf.mxu0
  %v1495 = vadd.f32 %v1371, %v1494
  %1496 = vmatprep.mubr.f32.mxu0 %v1091
  %1497 = vmatmul.mubr.f32.gmra.mxu0 %v1090
  %v1498 = vpop.f32.mrf.mxu0
  %v1499 = vadd.f32 %v1367, %v1498
  %v1500 = vpop.f32.mrf.mxu0
  %v1501 = vadd.f32 %v1371, %v1500
  %1502 = vmatprep.mubr.f32.mxu0 %v1095
  %1503 = vmatmul.mubr.f32.gmra.mxu0 %v1094
  %v1504 = vpop.f32.mrf.mxu0
  %v1505 = vadd.f32 %v1367, %v1504
  %v1506 = vpop.f32.mrf.mxu0
  %v1507 = vadd.f32 %v1371, %v1506
  %1508 = vmatprep.mubr.f32.mxu0 %v1099
  %1509 = vmatmul.mubr.f32.gmra.mxu0 %v1098
  %v1510 = vpop.f32.mrf.mxu0
  %v1511 = vadd.f32 %v1367, %v1510
  %v1512 = vpop.f32.mrf.mxu0
  %v1513 = vadd.f32 %v1371, %v1512
  %1514 = vmatprep.mubr.f32.mxu0 %v1103
  %1515 = vmatmul.mubr.f32.gmra.mxu0 %v1102
  %v1516 = vpop.f32.mrf.mxu0
  %v1517 = vadd.f32 %v1367, %v1516
  %v1518 = vpop.f32.mrf.mxu0
  %v1519 = vadd.f32 %v1371, %v1518
  %1520 = vdwg.mxu0
  %1521 = vmatprep.subr.mxu0 %v1295
  %1522 = vmatpush1.msra.mxu0 %v1294
  %1523 = vmatprep.subr.mxu0 %v1291
  %1524 = vmatpush1.msra.mxu0 %v1290
  %1525 = vmatprep.subr.mxu0 %v1287
  %1526 = vmatpush1.msra.mxu0 %v1286
  %1527 = vmatprep.subr.mxu0 %v1283
  %1528 = vmatpush1.msra.mxu0 %v1282
  %1529 = vmatprep.subr.mxu0 %v1279
  %1530 = vmatpush1.msra.mxu0 %v1278
  %1531 = vmatprep.subr.mxu0 %v1275
  %1532 = vmatpush1.msra.mxu0 %v1274
  %1533 = vmatprep.subr.mxu0 %v1271
  %1534 = vmatpush1.msra.mxu0 %v1270
  %1535 = vmatprep.subr.mxu0 %v1267
  %1536 = vmatpush1.msra.mxu0 %v1266
  %1537 = vmatprep.subr.mxu0 %v1263
  %1538 = vmatpush1.msra.mxu0 %v1262
  %1539 = vmatprep.subr.mxu0 %v1259
  %1540 = vmatpush1.msra.mxu0 %v1258
  %1541 = vmatprep.subr.mxu0 %v1255
  %1542 = vmatpush1.msra.mxu0 %v1254
  %1543 = vmatprep.subr.mxu0 %v1251
  %1544 = vmatpush1.msra.mxu0 %v1250
  %1545 = vmatprep.subr.mxu0 %v1247
  %1546 = vmatpush1.msra.mxu0 %v1246
  %1547 = vmatprep.subr.mxu0 %v1243
  %1548 = vmatpush1.msra.mxu0 %v1242
  %1549 = vmatprep.subr.mxu0 %v1239
  %1550 = vmatpush1.msra.mxu0 %v1238
  %1551 = vmatprep.subr.mxu0 %v1235
  %1552 = vmatpush1.msra.mxu0 %v1234
  %1553 = vmatprep.subr.mxu0 %v1359
  %1554 = vmatpush2.msra.mxu0 %v1358
  %1555 = vmatprep.subr.mxu0 %v1355
  %1556 = vmatpush2.msra.mxu0 %v1354
  %1557 = vmatprep.subr.mxu0 %v1351
  %1558 = vmatpush2.msra.mxu0 %v1350
  %1559 = vmatprep.subr.mxu0 %v1347
  %1560 = vmatpush2.msra.mxu0 %v1346
  %1561 = vmatprep.subr.mxu0 %v1343
  %1562 = vmatpush2.msra.mxu0 %v1342
  %1563 = vmatprep.subr.mxu0 %v1339
  %1564 = vmatpush2.msra.mxu0 %v1338
  %1565 = vmatprep.subr.mxu0 %v1335
  %1566 = vmatpush2.msra.mxu0 %v1334
  %1567 = vmatprep.subr.mxu0 %v1331
  %1568 = vmatpush2.msra.mxu0 %v1330
  %1569 = vmatprep.subr.mxu0 %v1327
  %1570 = vmatpush2.msra.mxu0 %v1326
  %1571 = vmatprep.subr.mxu0 %v1323
  %1572 = vmatpush2.msra.mxu0 %v1322
  %1573 = vmatprep.subr.mxu0 %v1319
  %1574 = vmatpush2.msra.mxu0 %v1318
  %1575 = vmatprep.subr.mxu0 %v1315
  %1576 = vmatpush2.msra.mxu0 %v1314
  %1577 = vmatprep.subr.mxu0 %v1311
  %1578 = vmatpush2.msra.mxu0 %v1310
  %1579 = vmatprep.subr.mxu0 %v1307
  %1580 = vmatpush2.msra.mxu0 %v1306
  %1581 = vmatprep.subr.mxu0 %v1303
  %1582 = vmatpush2.msra.mxu0 %v1302
  %1583 = vmatprep.subr.mxu0 %v1299
  %1584 = vmatpush2.msra.mxu0 %v1298
  %1585 = vmatprep.mubr.f32.mxu0 %v1061
  %1586 = vmatmul.mubr.f32.gmra.mxu0 %v1060
  %v1587 = vpop.f32.mrf.mxu0
  %v1588 = vadd.f32 %v1451, %v1587
  %v1589 = vpop.f32.mrf.mxu0
  %v1590 = vadd.f32 %v1453, %v1589
  %1591 = vmatprep.mubr.f32.mxu0 %v1065
  %1592 = vmatmul.mubr.f32.gmra.mxu0 %v1064
  %v1593 = vpop.f32.mrf.mxu0
  %v1594 = vadd.f32 %v1457, %v1593
  %v1595 = vpop.f32.mrf.mxu0
  %v1596 = vadd.f32 %v1459, %v1595
  %1597 = vmatprep.mubr.f32.mxu0 %v1069
  %1598 = vmatmul.mubr.f32.gmra.mxu0 %v1068
  %v1599 = vpop.f32.mrf.mxu0
  %v1600 = vadd.f32 %v1463, %v1599
  %v1601 = vpop.f32.mrf.mxu0
  %v1602 = vadd.f32 %v1465, %v1601
  %1603 = vmatprep.mubr.f32.mxu0 %v1073
  %1604 = vmatmul.mubr.f32.gmra.mxu0 %v1072
  %v1605 = vpop.f32.mrf.mxu0
  %v1606 = vadd.f32 %v1469, %v1605
  %v1607 = vpop.f32.mrf.mxu0
  %v1608 = vadd.f32 %v1471, %v1607
  %1609 = vmatprep.mubr.f32.mxu0 %v1077
  %1610 = vmatmul.mubr.f32.gmra.mxu0 %v1076
  %v1611 = vpop.f32.mrf.mxu0
  %v1612 = vadd.f32 %v1475, %v1611
  %v1613 = vpop.f32.mrf.mxu0
  %v1614 = vadd.f32 %v1477, %v1613
  %1615 = vmatprep.mubr.f32.mxu0 %v1081
  %1616 = vmatmul.mubr.f32.gmra.mxu0 %v1080
  %v1617 = vpop.f32.mrf.mxu0
  %v1618 = vadd.f32 %v1481, %v1617
  %v1619 = vpop.f32.mrf.mxu0
  %v1620 = vadd.f32 %v1483, %v1619
  %1621 = vmatprep.mubr.f32.mxu0 %v1085
  %1622 = vmatmul.mubr.f32.gmra.mxu0 %v1084
  %v1623 = vpop.f32.mrf.mxu0
  %v1624 = vadd.f32 %v1487, %v1623
  %v1625 = vpop.f32.mrf.mxu0
  %v1626 = vadd.f32 %v1489, %v1625
  %1627 = vmatprep.mubr.f32.mxu0 %v1089
  %1628 = vmatmul.mubr.f32.gmra.mxu0 %v1088
  %v1629 = vpop.f32.mrf.mxu0
  %v1630 = vadd.f32 %v1493, %v1629
  %v1631 = vpop.f32.mrf.mxu0
  %v1632 = vadd.f32 %v1495, %v1631
  %1633 = vmatprep.mubr.f32.mxu0 %v1093
  %1634 = vmatmul.mubr.f32.gmra.mxu0 %v1092
  %v1635 = vpop.f32.mrf.mxu0
  %v1636 = vadd.f32 %v1499, %v1635
  %v1637 = vpop.f32.mrf.mxu0
  %v1638 = vadd.f32 %v1501, %v1637
  %1639 = vmatprep.mubr.f32.mxu0 %v1097
  %1640 = vmatmul.mubr.f32.gmra.mxu0 %v1096
  %v1641 = vpop.f32.mrf.mxu0
  %v1642 = vadd.f32 %v1505, %v1641
  %v1643 = vpop.f32.mrf.mxu0
  %v1644 = vadd.f32 %v1507, %v1643
  %1645 = vmatprep.mubr.f32.mxu0 %v1101
  %1646 = vmatmul.mubr.f32.gmra.mxu0 %v1100
  %v1647 = vpop.f32.mrf.mxu0
  %v1648 = vadd.f32 %v1511, %v1647
  %v1649 = vpop.f32.mrf.mxu0
  %v1650 = vadd.f32 %v1513, %v1649
  %1651 = vmatprep.mubr.f32.mxu0 %v1105
  %1652 = vmatmul.mubr.f32.gmra.mxu0 %v1104
  %v1653 = vpop.f32.mrf.mxu0
  %v1654 = vadd.f32 %v1517, %v1653
  %v1655 = vpop.f32.mrf.mxu0
  %v1656 = vadd.f32 %v1519, %v1655
  %1657 = vdwg.mxu0
  %1658 = vmatprep.subr.mxu0 %v1169
  %1659 = vmatpush1.msra.mxu0 %v1168
  %1660 = vmatprep.subr.mxu0 %v1165
  %1661 = vmatpush1.msra.mxu0 %v1164
  %1662 = vmatprep.subr.mxu0 %v1161
  %1663 = vmatpush1.msra.mxu0 %v1160
  %1664 = vmatprep.subr.mxu0 %v1157
  %1665 = vmatpush1.msra.mxu0 %v1156
  %1666 = vmatprep.subr.mxu0 %v1153
  %1667 = vmatpush1.msra.mxu0 %v1152
  %1668 = vmatprep.subr.mxu0 %v1149
  %1669 = vmatpush1.msra.mxu0 %v1148
  %1670 = vmatprep.subr.mxu0 %v1145
  %1671 = vmatpush1.msra.mxu0 %v1144
  %1672 = vmatprep.subr.mxu0 %v1141
  %1673 = vmatpush1.msra.mxu0 %v1140
  %1674 = vmatprep.subr.mxu0 %v1137
  %1675 = vmatpush1.msra.mxu0 %v1136
  %1676 = vmatprep.subr.mxu0 %v1133
  %1677 = vmatpush1.msra.mxu0 %v1132
  %1678 = vmatprep.subr.mxu0 %v1129
  %1679 = vmatpush1.msra.mxu0 %v1128
  %1680 = vmatprep.subr.mxu0 %v1125
  %1681 = vmatpush1.msra.mxu0 %v1124
  %1682 = vmatprep.subr.mxu0 %v1121
  %1683 = vmatpush1.msra.mxu0 %v1120
  %1684 = vmatprep.subr.mxu0 %v1117
  %1685 = vmatpush1.msra.mxu0 %v1116
  %1686 = vmatprep.subr.mxu0 %v1113
  %1687 = vmatpush1.msra.mxu0 %v1112
  %1688 = vmatprep.subr.mxu0 %v1109
  %1689 = vmatpush1.msra.mxu0 %v1108
  %1690 = vmatprep.subr.mxu0 %v1233
  %1691 = vmatpush2.msra.mxu0 %v1232
  %1692 = vmatprep.subr.mxu0 %v1229
  %1693 = vmatpush2.msra.mxu0 %v1228
  %1694 = vmatprep.subr.mxu0 %v1225
  %1695 = vmatpush2.msra.mxu0 %v1224
  %1696 = vmatprep.subr.mxu0 %v1221
  %1697 = vmatpush2.msra.mxu0 %v1220
  %1698 = vmatprep.subr.mxu0 %v1217
  %1699 = vmatpush2.msra.mxu0 %v1216
  %1700 = vmatprep.subr.mxu0 %v1213
  %1701 = vmatpush2.msra.mxu0 %v1212
  %1702 = vmatprep.subr.mxu0 %v1209
  %1703 = vmatpush2.msra.mxu0 %v1208
  %1704 = vmatprep.subr.mxu0 %v1205
  %1705 = vmatpush2.msra.mxu0 %v1204
  %1706 = vmatprep.subr.mxu0 %v1201
  %1707 = vmatpush2.msra.mxu0 %v1200
  %1708 = vmatprep.subr.mxu0 %v1197
  %1709 = vmatpush2.msra.mxu0 %v1196
  %1710 = vmatprep.subr.mxu0 %v1193
  %1711 = vmatpush2.msra.mxu0 %v1192
  %1712 = vmatprep.subr.mxu0 %v1189
  %1713 = vmatpush2.msra.mxu0 %v1188
  %1714 = vmatprep.subr.mxu0 %v1185
  %1715 = vmatpush2.msra.mxu0 %v1184
  %1716 = vmatprep.subr.mxu0 %v1181
  %1717 = vmatpush2.msra.mxu0 %v1180
  %1718 = vmatprep.subr.mxu0 %v1177
  %1719 = vmatpush2.msra.mxu0 %v1176
  %1720 = vmatprep.subr.mxu0 %v1173
  %1721 = vmatpush2.msra.mxu0 %v1172
  %1722 = vmatprep.mubr.f32.mxu0 %v1059
  %1723 = vmatmul.mubr.f32.gmra.mxu0 %v1058
  %v1724 = vpop.f32.mrf.mxu0
  %v1725 = vadd.f32 %v1375, %v1724
  %v1726 = vpop.f32.mrf.mxu0
  %v1727 = vadd.f32 %v1379, %v1726
  %1728 = vmatprep.mubr.f32.mxu0 %v1063
  %1729 = vmatmul.mubr.f32.gmra.mxu0 %v1062
  %v1730 = vpop.f32.mrf.mxu0
  %v1731 = vadd.f32 %v1375, %v1730
  %v1732 = vpop.f32.mrf.mxu0
  %v1733 = vadd.f32 %v1379, %v1732
  %1734 = vmatprep.mubr.f32.mxu0 %v1067
  %1735 = vmatmul.mubr.f32.gmra.mxu0 %v1066
  %v1736 = vpop.f32.mrf.mxu0
  %v1737 = vadd.f32 %v1375, %v1736
  %v1738 = vpop.f32.mrf.mxu0
  %v1739 = vadd.f32 %v1379, %v1738
  %1740 = vmatprep.mubr.f32.mxu0 %v1071
  %1741 = vmatmul.mubr.f32.gmra.mxu0 %v1070
  %v1742 = vpop.f32.mrf.mxu0
  %v1743 = vadd.f32 %v1375, %v1742
  %v1744 = vpop.f32.mrf.mxu0
  %v1745 = vadd.f32 %v1379, %v1744
  %1746 = vmatprep.mubr.f32.mxu0 %v1075
  %1747 = vmatmul.mubr.f32.gmra.mxu0 %v1074
  %v1748 = vpop.f32.mrf.mxu0
  %v1749 = vadd.f32 %v1375, %v1748
  %v1750 = vpop.f32.mrf.mxu0
  %v1751 = vadd.f32 %v1379, %v1750
  %1752 = vmatprep.mubr.f32.mxu0 %v1079
  %1753 = vmatmul.mubr.f32.gmra.mxu0 %v1078
  %v1754 = vpop.f32.mrf.mxu0
  %v1755 = vadd.f32 %v1375, %v1754
  %v1756 = vpop.f32.mrf.mxu0
  %v1757 = vadd.f32 %v1379, %v1756
  %1758 = vmatprep.mubr.f32.mxu0 %v1083
  %1759 = vmatmul.mubr.f32.gmra.mxu0 %v1082
  %v1760 = vpop.f32.mrf.mxu0
  %v1761 = vadd.f32 %v1375, %v1760
  %v1762 = vpop.f32.mrf.mxu0
  %v1763 = vadd.f32 %v1379, %v1762
  %1764 = vmatprep.mubr.f32.mxu0 %v1087
  %1765 = vmatmul.mubr.f32.gmra.mxu0 %v1086
  %v1766 = vpop.f32.mrf.mxu0
  %v1767 = vadd.f32 %v1375, %v1766
  %v1768 = vpop.f32.mrf.mxu0
  %v1769 = vadd.f32 %v1379, %v1768
  %1770 = vmatprep.mubr.f32.mxu0 %v1091
  %1771 = vmatmul.mubr.f32.gmra.mxu0 %v1090
  %v1772 = vpop.f32.mrf.mxu0
  %v1773 = vadd.f32 %v1375, %v1772
  %v1774 = vpop.f32.mrf.mxu0
  %v1775 = vadd.f32 %v1379, %v1774
  %1776 = vmatprep.mubr.f32.mxu0 %v1095
  %1777 = vmatmul.mubr.f32.gmra.mxu0 %v1094
  %v1778 = vpop.f32.mrf.mxu0
  %v1779 = vadd.f32 %v1375, %v1778
  %v1780 = vpop.f32.mrf.mxu0
  %v1781 = vadd.f32 %v1379, %v1780
  %1782 = vmatprep.mubr.f32.mxu0 %v1099
  %1783 = vmatmul.mubr.f32.gmra.mxu0 %v1098
  %v1784 = vpop.f32.mrf.mxu0
  %v1785 = vadd.f32 %v1375, %v1784
  %v1786 = vpop.f32.mrf.mxu0
  %v1787 = vadd.f32 %v1379, %v1786
  %1788 = vmatprep.mubr.f32.mxu0 %v1103
  %1789 = vmatmul.mubr.f32.gmra.mxu0 %v1102
  %v1790 = vpop.f32.mrf.mxu0
  %v1791 = vadd.f32 %v1375, %v1790
  %v1792 = vpop.f32.mrf.mxu0
  %v1793 = vadd.f32 %v1379, %v1792
  %1794 = vdwg.mxu0
  %1795 = vmatprep.subr.mxu0 %v1297
  %1796 = vmatpush1.msra.mxu0 %v1296
  %1797 = vmatprep.subr.mxu0 %v1293
  %1798 = vmatpush1.msra.mxu0 %v1292
  %1799 = vmatprep.subr.mxu0 %v1289
  %1800 = vmatpush1.msra.mxu0 %v1288
  %1801 = vmatprep.subr.mxu0 %v1285
  %1802 = vmatpush1.msra.mxu0 %v1284
  %1803 = vmatprep.subr.mxu0 %v1281
  %1804 = vmatpush1.msra.mxu0 %v1280
  %1805 = vmatprep.subr.mxu0 %v1277
  %1806 = vmatpush1.msra.mxu0 %v1276
  %1807 = vmatprep.subr.mxu0 %v1273
  %1808 = vmatpush1.msra.mxu0 %v1272
  %1809 = vmatprep.subr.mxu0 %v1269
  %1810 = vmatpush1.msra.mxu0 %v1268
  %1811 = vmatprep.subr.mxu0 %v1265
  %1812 = vmatpush1.msra.mxu0 %v1264
  %1813 = vmatprep.subr.mxu0 %v1261
  %1814 = vmatpush1.msra.mxu0 %v1260
  %1815 = vmatprep.subr.mxu0 %v1257
  %1816 = vmatpush1.msra.mxu0 %v1256
  %1817 = vmatprep.subr.mxu0 %v1253
  %1818 = vmatpush1.msra.mxu0 %v1252
  %1819 = vmatprep.subr.mxu0 %v1249
  %1820 = vmatpush1.msra.mxu0 %v1248
  %1821 = vmatprep.subr.mxu0 %v1245
  %1822 = vmatpush1.msra.mxu0 %v1244
  %1823 = vmatprep.subr.mxu0 %v1241
  %1824 = vmatpush1.msra.mxu0 %v1240
  %1825 = vmatprep.subr.mxu0 %v1237
  %1826 = vmatpush1.msra.mxu0 %v1236
  %1827 = vmatprep.subr.mxu0 %v1361
  %1828 = vmatpush2.msra.mxu0 %v1360
  %1829 = vmatprep.subr.mxu0 %v1357
  %1830 = vmatpush2.msra.mxu0 %v1356
  %1831 = vmatprep.subr.mxu0 %v1353
  %1832 = vmatpush2.msra.mxu0 %v1352
  %1833 = vmatprep.subr.mxu0 %v1349
  %1834 = vmatpush2.msra.mxu0 %v1348
  %1835 = vmatprep.subr.mxu0 %v1345
  %1836 = vmatpush2.msra.mxu0 %v1344
  %1837 = vmatprep.subr.mxu0 %v1341
  %1838 = vmatpush2.msra.mxu0 %v1340
  %1839 = vmatprep.subr.mxu0 %v1337
  %1840 = vmatpush2.msra.mxu0 %v1336
  %1841 = vmatprep.subr.mxu0 %v1333
  %1842 = vmatpush2.msra.mxu0 %v1332
  %1843 = vmatprep.subr.mxu0 %v1329
  %1844 = vmatpush2.msra.mxu0 %v1328
  %1845 = vmatprep.subr.mxu0 %v1325
  %1846 = vmatpush2.msra.mxu0 %v1324
  %1847 = vmatprep.subr.mxu0 %v1321
  %1848 = vmatpush2.msra.mxu0 %v1320
  %1849 = vmatprep.subr.mxu0 %v1317
  %1850 = vmatpush2.msra.mxu0 %v1316
  %1851 = vmatprep.subr.mxu0 %v1313
  %1852 = vmatpush2.msra.mxu0 %v1312
  %1853 = vmatprep.subr.mxu0 %v1309
  %1854 = vmatpush2.msra.mxu0 %v1308
  %1855 = vmatprep.subr.mxu0 %v1305
  %1856 = vmatpush2.msra.mxu0 %v1304
  %1857 = vmatprep.subr.mxu0 %v1301
  %1858 = vmatpush2.msra.mxu0 %v1300
  %1859 = vmatprep.mubr.f32.mxu0 %v1061
  %1860 = vmatmul.mubr.f32.gmra.mxu0 %v1060
  %v1861 = vpop.f32.mrf.mxu0
  %v1862 = vadd.f32 %v1725, %v1861
  %v1863 = vpop.f32.mrf.mxu0
  %v1864 = vadd.f32 %v1727, %v1863
  %1865 = vmatprep.mubr.f32.mxu0 %v1065
  %1866 = vmatmul.mubr.f32.gmra.mxu0 %v1064
  %v1867 = vpop.f32.mrf.mxu0
  %v1868 = vadd.f32 %v1731, %v1867
  %v1869 = vpop.f32.mrf.mxu0
  %v1870 = vadd.f32 %v1733, %v1869
  %1871 = vmatprep.mubr.f32.mxu0 %v1069
  %1872 = vmatmul.mubr.f32.gmra.mxu0 %v1068
  %v1873 = vpop.f32.mrf.mxu0
  %v1874 = vadd.f32 %v1737, %v1873
  %v1875 = vpop.f32.mrf.mxu0
  %v1876 = vadd.f32 %v1739, %v1875
  %1877 = vmatprep.mubr.f32.mxu0 %v1073
  %1878 = vmatmul.mubr.f32.gmra.mxu0 %v1072
  %v1879 = vpop.f32.mrf.mxu0
  %v1880 = vadd.f32 %v1743, %v1879
  %v1881 = vpop.f32.mrf.mxu0
  %v1882 = vadd.f32 %v1745, %v1881
  %1883 = vmatprep.mubr.f32.mxu0 %v1077
  %1884 = vmatmul.mubr.f32.gmra.mxu0 %v1076
  %v1885 = vpop.f32.mrf.mxu0
  %v1886 = vadd.f32 %v1749, %v1885
  %v1887 = vpop.f32.mrf.mxu0
  %v1888 = vadd.f32 %v1751, %v1887
  %1889 = vmatprep.mubr.f32.mxu0 %v1081
  %1890 = vmatmul.mubr.f32.gmra.mxu0 %v1080
  %v1891 = vpop.f32.mrf.mxu0
  %v1892 = vadd.f32 %v1755, %v1891
  %v1893 = vpop.f32.mrf.mxu0
  %v1894 = vadd.f32 %v1757, %v1893
  %1895 = vmatprep.mubr.f32.mxu0 %v1085
  %1896 = vmatmul.mubr.f32.gmra.mxu0 %v1084
  %v1897 = vpop.f32.mrf.mxu0
  %v1898 = vadd.f32 %v1761, %v1897
  %v1899 = vpop.f32.mrf.mxu0
  %v1900 = vadd.f32 %v1763, %v1899
  %1901 = vmatprep.mubr.f32.mxu0 %v1089
  %1902 = vmatmul.mubr.f32.gmra.mxu0 %v1088
  %v1903 = vpop.f32.mrf.mxu0
  %v1904 = vadd.f32 %v1767, %v1903
  %v1905 = vpop.f32.mrf.mxu0
  %v1906 = vadd.f32 %v1769, %v1905
  %1907 = vmatprep.mubr.f32.mxu0 %v1093
  %1908 = vmatmul.mubr.f32.gmra.mxu0 %v1092
  %v1909 = vpop.f32.mrf.mxu0
  %v1910 = vadd.f32 %v1773, %v1909
  %v1911 = vpop.f32.mrf.mxu0
  %v1912 = vadd.f32 %v1775, %v1911
  %1913 = vmatprep.mubr.f32.mxu0 %v1097
  %1914 = vmatmul.mubr.f32.gmra.mxu0 %v1096
  %v1915 = vpop.f32.mrf.mxu0
  %v1916 = vadd.f32 %v1779, %v1915
  %v1917 = vpop.f32.mrf.mxu0
  %v1918 = vadd.f32 %v1781, %v1917
  %1919 = vmatprep.mubr.f32.mxu0 %v1101
  %1920 = vmatmul.mubr.f32.gmra.mxu0 %v1100
  %v1921 = vpop.f32.mrf.mxu0
  %v1922 = vadd.f32 %v1785, %v1921
  %v1923 = vpop.f32.mrf.mxu0
  %v1924 = vadd.f32 %v1787, %v1923
  %1925 = vmatprep.mubr.f32.mxu0 %v1105
  %1926 = vmatmul.mubr.f32.gmra.mxu0 %v1104
  %v1927 = vpop.f32.mrf.mxu0
  %v1928 = vadd.f32 %v1791, %v1927
  %v1929 = vpop.f32.mrf.mxu0
  %v1930 = vadd.f32 %v1793, %v1929
  %1931 = vdwg.mxu0
  %v1932 = vmax.f32 %v1588, 0.0
  %v1933 = vmax.f32 %v1590, 0.0
  %v1934 = vmax.f32 %v1862, 0.0
  %v1935 = vmax.f32 %v1864, 0.0
  %v1936 = vmax.f32 %v1594, 0.0
  %v1937 = vmax.f32 %v1596, 0.0
  %v1938 = vmax.f32 %v1868, 0.0
  %v1939 = vmax.f32 %v1870, 0.0
  %v1940 = vmax.f32 %v1600, 0.0
  %v1941 = vmax.f32 %v1602, 0.0
  %v1942 = vmax.f32 %v1874, 0.0
  %v1943 = vmax.f32 %v1876, 0.0
  %v1944 = vmax.f32 %v1606, 0.0
  %v1945 = vmax.f32 %v1608, 0.0
  %v1946 = vmax.f32 %v1880, 0.0
  %v1947 = vmax.f32 %v1882, 0.0
  %v1948 = vmax.f32 %v1612, 0.0
  %v1949 = vmax.f32 %v1614, 0.0
  %v1950 = vmax.f32 %v1886, 0.0
  %v1951 = vmax.f32 %v1888, 0.0
  %v1952 = vmax.f32 %v1618, 0.0
  %v1953 = vmax.f32 %v1620, 0.0
  %v1954 = vmax.f32 %v1892, 0.0
  %v1955 = vmax.f32 %v1894, 0.0
  %v1956 = vmax.f32 %v1624, 0.0
  %v1957 = vmax.f32 %v1626, 0.0
  %v1958 = vmax.f32 %v1898, 0.0
  %v1959 = vmax.f32 %v1900, 0.0
  %v1960 = vmax.f32 %v1630, 0.0
  %v1961 = vmax.f32 %v1632, 0.0
  %v1962 = vmax.f32 %v1904, 0.0
  %v1963 = vmax.f32 %v1906, 0.0
  %v1964 = vmax.f32 %v1636, 0.0
  %v1965 = vmax.f32 %v1638, 0.0
  %v1966 = vmax.f32 %v1910, 0.0
  %v1967 = vmax.f32 %v1912, 0.0
  %v1968 = vmax.f32 %v1642, 0.0
  %v1969 = vmax.f32 %v1644, 0.0
  %v1970 = vmax.f32 %v1916, 0.0
  %v1971 = vmax.f32 %v1918, 0.0
  %v1972 = vmax.f32 %v1648, 0.0
  %v1973 = vmax.f32 %v1650, 0.0
  %v1974 = vmax.f32 %v1922, 0.0
  %v1975 = vmax.f32 %v1924, 0.0
  %v1976 = vmax.f32 %v1654, 0.0
  %v1977 = vmax.f32 %v1656, 0.0
  %v1978 = vmax.f32 %v1928, 0.0
  %v1979 = vmax.f32 %v1930, 0.0
  %v1980 = vld [vmem:[%s10] sm:$0xff]
  %v1981 = vld [vmem:[%s10 + $0x8] sm:$0xff]
  %v1982 = vld [vmem:[%s10 + $0x10] sm:$0xff]
  %v1983 = vld [vmem:[%s10 + $0x18] sm:$0xff]
  %v1984 = vld [vmem:[%s10 + $0x20] sm:$0xff]
  %v1985 = vld [vmem:[%s10 + $0x28] sm:$0xff]
  %v1986 = vld [vmem:[%s10 + $0x30] sm:$0xff]
  %v1987 = vld [vmem:[%s10 + $0x38] sm:$0xff]
  %v1988 = vld [vmem:[%s10 + $0x40] sm:$0xff]
  %v1989 = vld [vmem:[%s10 + $0x48] sm:$0xff]
  %v1990 = vld [vmem:[%s10 + $0x50] sm:$0xff]
  %v1991 = vld [vmem:[%s10 + $0x58] sm:$0xff]
  %v1992 = vld [vmem:[%s10 + $0x60] sm:$0xff]
  %v1993 = vld [vmem:[%s10 + $0x68] sm:$0xff]
  %v1994 = vld [vmem:[%s10 + $0x70] sm:$0xff]
  %v1995 = vld [vmem:[%s10 + $0x78] sm:$0xff]
  %v1996 = vld [vmem:[%s10 + $0x80] sm:$0xff]
  %v1997 = vld [vmem:[%s10 + $0x88] sm:$0xff]
  %v1998 = vld [vmem:[%s10 + $0x90] sm:$0xff]
  %v1999 = vld [vmem:[%s10 + $0x98] sm:$0xff]
  %v2000 = vld [vmem:[%s10 + $0xa0] sm:$0xff]
  %v2001 = vld [vmem:[%s10 + $0xa8] sm:$0xff]
  %v2002 = vld [vmem:[%s10 + $0xb0] sm:$0xff]
  %v2003 = vld [vmem:[%s10 + $0xb8] sm:$0xff]
  %v2004 = vld [vmem:[%s10 + $0xc0] sm:$0xff]
  %v2005 = vld [vmem:[%s10 + $0xc8] sm:$0xff]
  %v2006 = vld [vmem:[%s10 + $0xd0] sm:$0xff]
  %v2007 = vld [vmem:[%s10 + $0xd8] sm:$0xff]
  %v2008 = vld [vmem:[%s10 + $0xe0] sm:$0xff]
  %v2009 = vld [vmem:[%s10 + $0xe8] sm:$0xff]
  %v2010 = vld [vmem:[%s10 + $0xf0] sm:$0xff]
  %v2011 = vld [vmem:[%s10 + $0xf8] sm:$0xff]
  %v2012 = vld [vmem:[%s10 + $0x100] sm:$0xff]
  %v2013 = vld [vmem:[%s10 + $0x108] sm:$0xff]
  %v2014 = vld [vmem:[%s10 + $0x110] sm:$0xff]
  %v2015 = vld [vmem:[%s10 + $0x118] sm:$0xff]
  %v2016 = vld [vmem:[%s10 + $0x120] sm:$0xff]
  %v2017 = vld [vmem:[%s10 + $0x128] sm:$0xff]
  %v2018 = vld [vmem:[%s10 + $0x130] sm:$0xff]
  %v2019 = vld [vmem:[%s10 + $0x138] sm:$0xff]
  %v2020 = vld [vmem:[%s10 + $0x140] sm:$0xff]
  %v2021 = vld [vmem:[%s10 + $0x148] sm:$0xff]
  %v2022 = vld [vmem:[%s10 + $0x150] sm:$0xff]
  %v2023 = vld [vmem:[%s10 + $0x158] sm:$0xff]
  %v2024 = vld [vmem:[%s10 + $0x160] sm:$0xff]
  %v2025 = vld [vmem:[%s10 + $0x168] sm:$0xff]
  %v2026 = vld [vmem:[%s10 + $0x170] sm:$0xff]
  %v2027 = vld [vmem:[%s10 + $0x178] sm:$0xff]
  %v2028 = vld [vmem:[%s10 + $0x180] sm:$0xff]
  %v2029 = vld [vmem:[%s10 + $0x188] sm:$0xff]
  %v2030 = vld [vmem:[%s10 + $0x190] sm:$0xff]
  %v2031 = vld [vmem:[%s10 + $0x198] sm:$0xff]
  %v2032 = vld [vmem:[%s10 + $0x1a0] sm:$0xff]
  %v2033 = vld [vmem:[%s10 + $0x1a8] sm:$0xff]
  %v2034 = vld [vmem:[%s10 + $0x1b0] sm:$0xff]
  %v2035 = vld [vmem:[%s10 + $0x1b8] sm:$0xff]
  %v2036 = vld [vmem:[%s10 + $0x1c0] sm:$0xff]
  %v2037 = vld [vmem:[%s10 + $0x1c8] sm:$0xff]
  %v2038 = vld [vmem:[%s10 + $0x1d0] sm:$0xff]
  %v2039 = vld [vmem:[%s10 + $0x1d8] sm:$0xff]
  %v2040 = vld [vmem:[%s10 + $0x1e0] sm:$0xff]
  %v2041 = vld [vmem:[%s10 + $0x1e8] sm:$0xff]
  %v2042 = vld [vmem:[%s10 + $0x1f0] sm:$0xff]
  %v2043 = vld [vmem:[%s10 + $0x1f8] sm:$0xff]
  %v2044 = vld [vmem:[%s11] sm:$0x1]
  %v2046 = vlaneseq
  %v2047 = vshrl.u32 %v2046, 7
  %v2048 = vsub.s32 0, %v2047
  %v2049 = vrot.slane %v2044, %v2048
  %2051 = vmatprep.subr.mxu0 0.0
  %2052 = vmatpush1.msra.mxu0 %v1995
  %2053 = vmatprep.subr.mxu0 0.0
  %2054 = vmatpush1.msra.mxu0 %v1994
  %2055 = vmatprep.subr.mxu0 0.0
  %2056 = vmatpush1.msra.mxu0 %v1993
  %2057 = vmatprep.subr.mxu0 0.0
  %2058 = vmatpush1.msra.mxu0 %v1992
  %2059 = vmatprep.subr.mxu0 0.0
  %2060 = vmatpush1.msra.mxu0 %v1991
  %2061 = vmatprep.subr.mxu0 0.0
  %2062 = vmatpush1.msra.mxu0 %v1990
  %2063 = vmatprep.subr.mxu0 0.0
  %2064 = vmatpush1.msra.mxu0 %v1989
  %2065 = vmatprep.subr.mxu0 0.0
  %2066 = vmatpush1.msra.mxu0 %v1988
  %2067 = vmatprep.subr.mxu0 0.0
  %2068 = vmatpush1.msra.mxu0 %v1987
  %2069 = vmatprep.subr.mxu0 0.0
  %2070 = vmatpush1.msra.mxu0 %v1986
  %2071 = vmatprep.subr.mxu0 0.0
  %2072 = vmatpush1.msra.mxu0 %v1985
  %2073 = vmatprep.subr.mxu0 0.0
  %2074 = vmatpush1.msra.mxu0 %v1984
  %2075 = vmatprep.subr.mxu0 0.0
  %2076 = vmatpush1.msra.mxu0 %v1983
  %2077 = vmatprep.subr.mxu0 0.0
  %2078 = vmatpush1.msra.mxu0 %v1982
  %2079 = vmatprep.subr.mxu0 0.0
  %2080 = vmatpush1.msra.mxu0 %v1981
  %2081 = vmatprep.subr.mxu0 0.0
  %2082 = vmatpush1.msra.mxu0 %v1980
  %2083 = vmatprep.subr.mxu0 0.0
  %2084 = vmatpush2.msra.mxu0 %v2011
  %2085 = vmatprep.subr.mxu0 0.0
  %2086 = vmatpush2.msra.mxu0 %v2010
  %2087 = vmatprep.subr.mxu0 0.0
  %2088 = vmatpush2.msra.mxu0 %v2009
  %2089 = vmatprep.subr.mxu0 0.0
  %2090 = vmatpush2.msra.mxu0 %v2008
  %2091 = vmatprep.subr.mxu0 0.0
  %2092 = vmatpush2.msra.mxu0 %v2007
  %2093 = vmatprep.subr.mxu0 0.0
  %2094 = vmatpush2.msra.mxu0 %v2006
  %2095 = vmatprep.subr.mxu0 0.0
  %2096 = vmatpush2.msra.mxu0 %v2005
  %2097 = vmatprep.subr.mxu0 0.0
  %2098 = vmatpush2.msra.mxu0 %v2004
  %2099 = vmatprep.subr.mxu0 0.0
  %2100 = vmatpush2.msra.mxu0 %v2003
  %2101 = vmatprep.subr.mxu0 0.0
  %2102 = vmatpush2.msra.mxu0 %v2002
  %2103 = vmatprep.subr.mxu0 0.0
  %2104 = vmatpush2.msra.mxu0 %v2001
  %2105 = vmatprep.subr.mxu0 0.0
  %2106 = vmatpush2.msra.mxu0 %v2000
  %2107 = vmatprep.subr.mxu0 0.0
  %2108 = vmatpush2.msra.mxu0 %v1999
  %2109 = vmatprep.subr.mxu0 0.0
  %2110 = vmatpush2.msra.mxu0 %v1998
  %2111 = vmatprep.subr.mxu0 0.0
  %2112 = vmatpush2.msra.mxu0 %v1997
  %2113 = vmatprep.subr.mxu0 0.0
  %2114 = vmatpush2.msra.mxu0 %v1996
  %2115 = vmatprep.mubr.f32.mxu0 %v1933
  %2116 = vmatmul.mubr.f32.gmra.mxu0 %v1932
  %v2117 = vpop.f32.mrf.mxu0
  %v2118 = vadd.f32 %v2049, %v2117
  %v2119 = vpop.f32.mrf.mxu0
  %2120 = vmatprep.mubr.f32.mxu0 %v1937
  %2121 = vmatmul.mubr.f32.gmra.mxu0 %v1936
  %v2122 = vpop.f32.mrf.mxu0
  %v2123 = vadd.f32 %v2049, %v2122
  %v2124 = vpop.f32.mrf.mxu0
  %2125 = vmatprep.mubr.f32.mxu0 %v1941
  %2126 = vmatmul.mubr.f32.gmra.mxu0 %v1940
  %v2127 = vpop.f32.mrf.mxu0
  %v2128 = vadd.f32 %v2049, %v2127
  %v2129 = vpop.f32.mrf.mxu0
  %2130 = vmatprep.mubr.f32.mxu0 %v1945
  %2131 = vmatmul.mubr.f32.gmra.mxu0 %v1944
  %v2132 = vpop.f32.mrf.mxu0
  %v2133 = vadd.f32 %v2049, %v2132
  %v2134 = vpop.f32.mrf.mxu0
  %2135 = vmatprep.mubr.f32.mxu0 %v1949
  %2136 = vmatmul.mubr.f32.gmra.mxu0 %v1948
  %v2137 = vpop.f32.mrf.mxu0
  %v2138 = vadd.f32 %v2049, %v2137
  %v2139 = vpop.f32.mrf.mxu0
  %2140 = vmatprep.mubr.f32.mxu0 %v1953
  %2141 = vmatmul.mubr.f32.gmra.mxu0 %v1952
  %v2142 = vpop.f32.mrf.mxu0
  %v2143 = vadd.f32 %v2049, %v2142
  %v2144 = vpop.f32.mrf.mxu0
  %2145 = vmatprep.mubr.f32.mxu0 %v1957
  %2146 = vmatmul.mubr.f32.gmra.mxu0 %v1956
  %v2147 = vpop.f32.mrf.mxu0
  %v2148 = vadd.f32 %v2049, %v2147
  %v2149 = vpop.f32.mrf.mxu0
  %2150 = vmatprep.mubr.f32.mxu0 %v1961
  %2151 = vmatmul.mubr.f32.gmra.mxu0 %v1960
  %v2152 = vpop.f32.mrf.mxu0
  %v2153 = vadd.f32 %v2049, %v2152
  %v2154 = vpop.f32.mrf.mxu0
  %2155 = vmatprep.mubr.f32.mxu0 %v1965
  %2156 = vmatmul.mubr.f32.gmra.mxu0 %v1964
  %v2157 = vpop.f32.mrf.mxu0
  %v2158 = vadd.f32 %v2049, %v2157
  %v2159 = vpop.f32.mrf.mxu0
  %2160 = vmatprep.mubr.f32.mxu0 %v1969
  %2161 = vmatmul.mubr.f32.gmra.mxu0 %v1968
  %v2162 = vpop.f32.mrf.mxu0
  %v2163 = vadd.f32 %v2049, %v2162
  %v2164 = vpop.f32.mrf.mxu0
  %2165 = vmatprep.mubr.f32.mxu0 %v1973
  %2166 = vmatmul.mubr.f32.gmra.mxu0 %v1972
  %v2167 = vpop.f32.mrf.mxu0
  %v2168 = vadd.f32 %v2049, %v2167
  %v2169 = vpop.f32.mrf.mxu0
  %2170 = vmatprep.mubr.f32.mxu0 %v1977
  %2171 = vmatmul.mubr.f32.gmra.mxu0 %v1976
  %v2172 = vpop.f32.mrf.mxu0
  %v2173 = vadd.f32 %v2049, %v2172
  %v2174 = vpop.f32.mrf.mxu0
  %2175 = vdwg.mxu0
  %2176 = vmatprep.subr.mxu0 0.0
  %2177 = vmatpush1.msra.mxu0 %v2027
  %2178 = vmatprep.subr.mxu0 0.0
  %2179 = vmatpush1.msra.mxu0 %v2026
  %2180 = vmatprep.subr.mxu0 0.0
  %2181 = vmatpush1.msra.mxu0 %v2025
  %2182 = vmatprep.subr.mxu0 0.0
  %2183 = vmatpush1.msra.mxu0 %v2024
  %2184 = vmatprep.subr.mxu0 0.0
  %2185 = vmatpush1.msra.mxu0 %v2023
  %2186 = vmatprep.subr.mxu0 0.0
  %2187 = vmatpush1.msra.mxu0 %v2022
  %2188 = vmatprep.subr.mxu0 0.0
  %2189 = vmatpush1.msra.mxu0 %v2021
  %2190 = vmatprep.subr.mxu0 0.0
  %2191 = vmatpush1.msra.mxu0 %v2020
  %2192 = vmatprep.subr.mxu0 0.0
  %2193 = vmatpush1.msra.mxu0 %v2019
  %2194 = vmatprep.subr.mxu0 0.0
  %2195 = vmatpush1.msra.mxu0 %v2018
  %2196 = vmatprep.subr.mxu0 0.0
  %2197 = vmatpush1.msra.mxu0 %v2017
  %2198 = vmatprep.subr.mxu0 0.0
  %2199 = vmatpush1.msra.mxu0 %v2016
  %2200 = vmatprep.subr.mxu0 0.0
  %2201 = vmatpush1.msra.mxu0 %v2015
  %2202 = vmatprep.subr.mxu0 0.0
  %2203 = vmatpush1.msra.mxu0 %v2014
  %2204 = vmatprep.subr.mxu0 0.0
  %2205 = vmatpush1.msra.mxu0 %v2013
  %2206 = vmatprep.subr.mxu0 0.0
  %2207 = vmatpush1.msra.mxu0 %v2012
  %2208 = vmatprep.subr.mxu0 0.0
  %2209 = vmatpush2.msra.mxu0 %v2043
  %2210 = vmatprep.subr.mxu0 0.0
  %2211 = vmatpush2.msra.mxu0 %v2042
  %2212 = vmatprep.subr.mxu0 0.0
  %2213 = vmatpush2.msra.mxu0 %v2041
  %2214 = vmatprep.subr.mxu0 0.0
  %2215 = vmatpush2.msra.mxu0 %v2040
  %2216 = vmatprep.subr.mxu0 0.0
  %2217 = vmatpush2.msra.mxu0 %v2039
  %2218 = vmatprep.subr.mxu0 0.0
  %2219 = vmatpush2.msra.mxu0 %v2038
  %2220 = vmatprep.subr.mxu0 0.0
  %2221 = vmatpush2.msra.mxu0 %v2037
  %2222 = vmatprep.subr.mxu0 0.0
  %2223 = vmatpush2.msra.mxu0 %v2036
  %2224 = vmatprep.subr.mxu0 0.0
  %2225 = vmatpush2.msra.mxu0 %v2035
  %2226 = vmatprep.subr.mxu0 0.0
  %2227 = vmatpush2.msra.mxu0 %v2034
  %2228 = vmatprep.subr.mxu0 0.0
  %2229 = vmatpush2.msra.mxu0 %v2033
  %2230 = vmatprep.subr.mxu0 0.0
  %2231 = vmatpush2.msra.mxu0 %v2032
  %2232 = vmatprep.subr.mxu0 0.0
  %2233 = vmatpush2.msra.mxu0 %v2031
  %2234 = vmatprep.subr.mxu0 0.0
  %2235 = vmatpush2.msra.mxu0 %v2030
  %2236 = vmatprep.subr.mxu0 0.0
  %2237 = vmatpush2.msra.mxu0 %v2029
  %2238 = vmatprep.subr.mxu0 0.0
  %2239 = vmatpush2.msra.mxu0 %v2028
  %2240 = vmatprep.mubr.f32.mxu0 %v1935
  %2241 = vmatmul.mubr.f32.gmra.mxu0 %v1934
  %v2242 = vpop.f32.mrf.mxu0
  %v2243 = vadd.f32 %v2118, %v2242
  %v2244 = vpop.f32.mrf.mxu0
  %2245 = vmatprep.mubr.f32.mxu0 %v1939
  %2246 = vmatmul.mubr.f32.gmra.mxu0 %v1938
  %v2247 = vpop.f32.mrf.mxu0
  %v2248 = vadd.f32 %v2123, %v2247
  %v2249 = vpop.f32.mrf.mxu0
  %2250 = vmatprep.mubr.f32.mxu0 %v1943
  %2251 = vmatmul.mubr.f32.gmra.mxu0 %v1942
  %v2252 = vpop.f32.mrf.mxu0
  %v2253 = vadd.f32 %v2128, %v2252
  %v2254 = vpop.f32.mrf.mxu0
  %2255 = vmatprep.mubr.f32.mxu0 %v1947
  %2256 = vmatmul.mubr.f32.gmra.mxu0 %v1946
  %v2257 = vpop.f32.mrf.mxu0
  %v2258 = vadd.f32 %v2133, %v2257
  %v2259 = vpop.f32.mrf.mxu0
  %2260 = vmatprep.mubr.f32.mxu0 %v1951
  %2261 = vmatmul.mubr.f32.gmra.mxu0 %v1950
  %v2262 = vpop.f32.mrf.mxu0
  %v2263 = vadd.f32 %v2138, %v2262
  %v2264 = vpop.f32.mrf.mxu0
  %2265 = vmatprep.mubr.f32.mxu0 %v1955
  %2266 = vmatmul.mubr.f32.gmra.mxu0 %v1954
  %v2267 = vpop.f32.mrf.mxu0
  %v2268 = vadd.f32 %v2143, %v2267
  %v2269 = vpop.f32.mrf.mxu0
  %2270 = vmatprep.mubr.f32.mxu0 %v1959
  %2271 = vmatmul.mubr.f32.gmra.mxu0 %v1958
  %v2272 = vpop.f32.mrf.mxu0
  %v2273 = vadd.f32 %v2148, %v2272
  %v2274 = vpop.f32.mrf.mxu0
  %2275 = vmatprep.mubr.f32.mxu0 %v1963
  %2276 = vmatmul.mubr.f32.gmra.mxu0 %v1962
  %v2277 = vpop.f32.mrf.mxu0
  %v2278 = vadd.f32 %v2153, %v2277
  %v2279 = vpop.f32.mrf.mxu0
  %2280 = vmatprep.mubr.f32.mxu0 %v1967
  %2281 = vmatmul.mubr.f32.gmra.mxu0 %v1966
  %v2282 = vpop.f32.mrf.mxu0
  %v2283 = vadd.f32 %v2158, %v2282
  %v2284 = vpop.f32.mrf.mxu0
  %2285 = vmatprep.mubr.f32.mxu0 %v1971
  %2286 = vmatmul.mubr.f32.gmra.mxu0 %v1970
  %v2287 = vpop.f32.mrf.mxu0
  %v2288 = vadd.f32 %v2163, %v2287
  %v2289 = vpop.f32.mrf.mxu0
  %2290 = vmatprep.mubr.f32.mxu0 %v1975
  %2291 = vmatmul.mubr.f32.gmra.mxu0 %v1974
  %v2292 = vpop.f32.mrf.mxu0
  %v2293 = vadd.f32 %v2168, %v2292
  %v2294 = vpop.f32.mrf.mxu0
  %2295 = vmatprep.mubr.f32.mxu0 %v1979
  %2296 = vmatmul.mubr.f32.gmra.mxu0 %v1978
  %v2297 = vpop.f32.mrf.mxu0
  %v2298 = vadd.f32 %v2173, %v2297
  %v2299 = vpop.f32.mrf.mxu0
  %2300 = vdwg.mxu0
  %2301 = vst [vmem:[%s12] sm:$0xff] %v2243
  %2302 = vst [vmem:[%s12 + $0x8] sm:$0xff] %v2248
  %2303 = vst [vmem:[%s12 + $0x10] sm:$0xff] %v2253
  %2304 = vst [vmem:[%s12 + $0x18] sm:$0xff] %v2258
  %2305 = vst [vmem:[%s12 + $0x20] sm:$0xff] %v2263
  %2306 = vst [vmem:[%s12 + $0x28] sm:$0xff] %v2268
  %2307 = vst [vmem:[%s12 + $0x30] sm:$0xff] %v2273
  %2308 = vst [vmem:[%s12 + $0x38] sm:$0xff] %v2278
  %2309 = vst [vmem:[%s12 + $0x40] sm:$0xff] %v2283
  %2310 = vst [vmem:[%s12 + $0x48] sm:$0xff] %v2288
  %2311 = vst [vmem:[%s12 + $0x50] sm:$0xff] %v2293
  %2312 = vst [vmem:[%s12 + $0x58] sm:$0xff] %v2298
  // Predicated region
  $region50: #{caption_forward.1} parent=0 // pred_check
    _
  $region51: #{caption_forward.1} parent=0 // pred_check_branch
    %2314 = sbr.rel (0) target = $region53
  $region52: #{caption_forward.1} parent=0 // pred_region
    _
  $region53: #{caption_forward.1} parent=0 // pred_fallthru
    _
  // Predicated region
  $region54: #{caption_forward.1} parent=0 // pred_check
    _
  $region55: #{caption_forward.1} parent=0 // pred_check_branch
    %2316 = sbr.rel (0) target = $region57
  $region56: #{caption_forward.1} parent=0 // pred_region
    _
  $region57: #{caption_forward.1} parent=0 // pred_fallthru
    _

</llo_original>
